<compile_context>
chip_gen: v7x
topology: tpu7x:2x2x1
jax: 0.10.0
libtpu: 0.0.40
codegen_flags: <defaults>
</compile_context>

<pallas_src>
import functools

import jax
import jax.numpy as jnp
from jax.experimental import pallas as pl
from jax.experimental.pallas import tpu as pltpu

LANE = 128


def _round_up(n, m):
    return ((n + m - 1) // m) * m


# ---------------------------------------------------------------------------
# Fused Pallas kernel: the whole MLP in one kernel body
# ---------------------------------------------------------------------------
def _mlp_fused_kernel(x_ref, sb_ref, w0_h, w1_h, w2_h, wt_h, o_ref,
                      w0_v, w1_v, w2_v, wt_v, sems, *, layout, quantized):
    """layout: static tuple of (buf_idx, row_start, rows, out_cols) per layer.

    Hidden layers: h = relu((h @ Wq_i) * qscale_i + bias_i); the final layer
    has no ReLU.  Matmuls run bf16 × bf16 → f32 on the MXU; epilogue in f32.
    """
    w_hbm = (w0_h, w1_h, w2_h, wt_h)
    w_vmem = (w0_v, w1_v, w2_v, wt_v)
    copies = [pltpu.make_async_copy(w_hbm[i], w_vmem[i], sems.at[i])
              for i in range(len(w_hbm))]
    # Issue ALL weight DMAs up front; each layer waits only for its own
    # buffer, so layer-i compute overlaps the still-in-flight DMAs of the
    # later (and larger share of) weights.
    for c in copies:
        c.start()

    n_layers = len(layout)
    waited = [False] * len(w_vmem)
    h = x_ref[...]                                    # (B_pad, in0) f32
    col = 0
    for i, (bi, r0, rows, nout) in enumerate(layout):
        if not waited[bi]:
            copies[bi].wait()
            waited[bi] = True
        w = w_vmem[bi][r0:r0 + rows, :]               # static, tile-aligned slice
        if quantized:
            # int8 → bf16 is exact (|q| <= 127); per-channel scale applied below.
            w = w.astype(jnp.float32).astype(jnp.bfloat16)
        y = jnp.dot(h.astype(jnp.bfloat16), w,
                    preferred_element_type=jnp.float32)
        # f32 epilogue: dequant scale (ones in bf16 mode) and folded-BN bias.
        y = y * sb_ref[0:1, col:col + nout] + sb_ref[1:2, col:col + nout]
        if i < n_layers - 1:
            y = jnp.maximum(y, 0.0)                   # ReLU (BN folded into next layer)
        h = y
        col += nout
    o_ref[...] = h.astype(o_ref.dtype)


def mlp_forward(x, w0, w1, w2, wt, sb, *, layout):
    """Run the entire MLP as one Pallas call; returns the (row, lane)-padded output."""
    batch, feat = x.shape
    b_pad = _round_up(max(batch, 16), 16)      # fill bf16 (16, 128) LHS vreg tiles
    in0 = layout[0][2]
    x_pad = jnp.pad(x.astype(jnp.float32), ((0, b_pad - batch), (0, in0 - feat)))

    out_pad = layout[-1][3]
    quantized = (w0.dtype == jnp.int8)
    vmem = pl.BlockSpec(memory_space=pltpu.MemorySpace.VMEM)
    hbm = pl.BlockSpec(memory_space=pl.ANY)    # raw HBM refs; DMA'd manually in-kernel
    kernel = functools.partial(_mlp_fused_kernel, layout=layout,
                               quantized=quantized)
    return pl.pallas_call(
        kernel,
        out_shape=jax.ShapeDtypeStruct((b_pad, out_pad), jnp.float32),
        in_specs=[vmem, vmem, hbm, hbm, hbm, hbm],
        out_specs=vmem,
        scratch_shapes=[
            pltpu.VMEM(w0.shape, w0.dtype),
            pltpu.VMEM(w1.shape, w1.dtype),
            pltpu.VMEM(w2.shape, w2.dtype),
            pltpu.VMEM(wt.shape, wt.dtype),
            pltpu.SemaphoreType.DMA((4,)),
        ],
        compiler_params=pltpu.CompilerParams(
            vmem_limit_bytes=8 * 1024 * 1024),
    )(x_pad, sb, w0, w1, w2, wt)


# ---------------------------------------------------------------------------
# Parameter setup (deterministic, synthetic) + BN folding + packing/quant
# ---------------------------------------------------------------------------
def pick_weight_dtype():
    kind = jax.devices()[0].device_kind.lower()
    # int8 storage halves the weight DMA stream on v5e/v6e.  v7x (and any
    # unknown chip) stays bf16: no integer MXU path there, and its HBM is fast
    # enough that the in-kernel dequant would dominate.
    if "v5" in kind or "v6" in kind:
        return jnp.int8
    return jnp.bfloat16


def init_mlp_params(key, input_size, output_size, *, weight_dtype, eps=1e-5):
    dims = [input_size, 1024, 512, 256, 128, 64, 32, output_size]
    n_layers = len(dims) - 1

    # Raw PyTorch-style f32 parameters (Linear + eval-mode BN scale/shift).
    raw = []
    for i in range(n_layers):
        fan_in, fan_out = dims[i], dims[i + 1]
        key, kw, kb, kg, kbe, km, kv = jax.random.split(key, 7)
        w = (jax.random.normal(kw, (fan_in, fan_out), jnp.float32)
             / jnp.sqrt(jnp.float32(fan_in)))
        b = jax.random.normal(kb, (fan_out,), jnp.float32) * 0.01
        layer = dict(w=w, b=b)
        if i < n_layers - 1:  # hidden layer → followed by BatchNorm1d(fan_out)
            gamma = 1.0 + 0.1 * jax.random.normal(kg, (fan_out,), jnp.float32)
            beta = 0.1 * jax.random.normal(kbe, (fan_out,), jnp.float32)
            running_mean = 0.1 * jax.random.normal(km, (fan_out,), jnp.float32)
            running_var = jnp.abs(
                1.0 + 0.1 * jax.random.normal(kv, (fan_out,), jnp.float32))
            scale = gamma / jnp.sqrt(running_var + eps)
            shift = beta - running_mean * scale
            layer.update(scale=scale, shift=shift)
        raw.append(layer)

    # Fold BN of layer i-1 into Linear i (exact in eval mode), pad only where
    # needed (lane dim → 128; layer-0 rows stay 32), then quantize/cast.
    out_pads = [_round_up(dims[i + 1], LANE) for i in range(n_layers)]
    in_pads = [_round_up(dims[0], 32)] + out_pads[:-1]
    ws, scales, biases = [], [], []
    for i in range(n_layers):
        w = raw[i]["w"]
        b = raw[i]["b"]
        if i > 0:
            s_prev = raw[i - 1]["scale"]
            t_prev = raw[i - 1]["shift"]
            b = t_prev @ raw[i]["w"] + b          # uses the UN-scaled W_i
            w = s_prev[:, None] * w
        w_p = jnp.zeros((in_pads[i], out_pads[i]), jnp.float32)
        w_p = w_p.at[:w.shape[0], :w.shape[1]].set(w)
        b_p = jnp.zeros((out_pads[i],), jnp.float32).at[:b.shape[0]].set(b)
        if weight_dtype == jnp.int8:
            m = jnp.max(jnp.abs(w_p), axis=0)
            qs = jnp.where(m > 0, m / 127.0, 1.0)
            w_q = jnp.clip(jnp.round(w_p / qs), -127.0, 127.0).astype(jnp.int8)
        else:
            qs = jnp.ones((out_pads[i],), jnp.float32)
            w_q = w_p.astype(weight_dtype)
        ws.append(w_q)
        scales.append(qs.astype(jnp.float32))
        biases.append(b_p)

    # Coalesce operands: tail weights (layers 3..) stacked along rows, and all
    # (dequant-scale, bias) vectors in one (2, total_out) f32 buffer.
    wt = jnp.concatenate(ws[3:], axis=0)
    sb = jnp.stack([jnp.concatenate(scales), jnp.concatenate(biases)], axis=0)

    layout = []
    row = 0
    for i in range(n_layers):
        if i < 3:
            layout.append((i, 0, in_pads[i], out_pads[i]))
        else:
            layout.append((3, row, in_pads[i], out_pads[i]))
            row += in_pads[i]
    packed = dict(w0=ws[0], w1=ws[1], w2=ws[2], wt=wt, sb=sb)
    return packed, tuple(layout), raw


# ---------------------------------------------------------------------------
# References
# ---------------------------------------------------------------------------
def mlp_reference_fused(x, packed, layout, output_size):
    """Exact mirror of the kernel math (same packed/quantized params)."""
    bufs = (packed["w0"], packed["w1"], packed["w2"], packed["wt"])
    sb = packed["sb"]
    h = jnp.pad(x.astype(jnp.float32), ((0, 0), (0, layout[0][2] - x.shape[1])))
    n = len(layout)
    col = 0
    for i, (bi, r0, rows, nout) in enumerate(layout):
        w = bufs[bi][r0:r0 + rows, :]
        if w.dtype != jnp.bfloat16:
            w = w.astype(jnp.float32).astype(jnp.bfloat16)
        y = jnp.dot(h.astype(jnp.bfloat16), w, preferred_element_type=jnp.float32)
        y = y * sb[0:1, col:col + nout] + sb[1:2, col:col + nout]
        if i < n - 1:
            y = jnp.maximum(y, 0.0)
        h = y
        col += nout
    return h[:, :output_size]


def mlp_reference_f32(x, raw_params):
    """PyTorch eval-mode semantics in plain f32 (unfolded, unpadded)."""
    h = x
    n = len(raw_params)
    for i, p in enumerate(raw_params):
        y = jnp.matmul(h, p["w"], precision=jax.lax.Precision.HIGHEST) + p["b"]
        if i < n - 1:
            y = jnp.maximum(y, 0.0) * p["scale"] + p["shift"]
        h = y
    return h


if __name__ == "__main__":
    INPUT_SIZE = 32
    OUTPUT_SIZE = 10
    BATCH = 8

    key = jax.random.PRNGKey(0)
    key, kx = jax.random.split(key)
    x = jax.random.normal(kx, (BATCH, INPUT_SIZE), jnp.float32)

    wdtype = pick_weight_dtype()
    packed, layout, raw = init_mlp_params(key, INPUT_SIZE, OUTPUT_SIZE,
                                          weight_dtype=wdtype)

    fwd = jax.jit(mlp_forward, static_argnames="layout")
    out_padded = fwd(x, packed["w0"], packed["w1"], packed["w2"],
                     packed["wt"], packed["sb"], layout=layout)
    out_padded = jax.block_until_ready(out_padded)
    out = out_padded[:BATCH, :OUTPUT_SIZE]
    assert out.shape == (BATCH, OUTPUT_SIZE), out.shape

    # 1) Exact-mirror reference (same packed/quantized params, same math) —
    #    tight elementwise check that gates kernel correctness.
    ref_exact = mlp_reference_fused(x, packed, layout, OUTPUT_SIZE)
    assert jnp.allclose(out, ref_exact, atol=1e-2, rtol=1e-2), \
        "mismatch vs exact-mirror reference"

    # 2) Plain-f32 PyTorch-eval reference (unfolded, unquantized) — loose
    #    sanity check; the only differences are bf16 activations and (on
    #    v5e/v6e) int8 per-channel weight quantization.
    ref_f32 = mlp_reference_f32(x, raw)
    rel_err = jnp.linalg.norm(out - ref_f32) / jnp.linalg.norm(ref_f32)
    tol = 0.10 if wdtype == jnp.int8 else 0.03
    assert float(rel_err) < tol, \
        f"relative error vs f32 eval-mode reference too large: {float(rel_err)}"

    print("KERNEL_OK")
</pallas_src>

<mosaic_0001>
module attributes {stable_mosaic.version = 11 : i64} {
  func.func @_mlp_fused_kernel(%arg0: memref<16x32xf32, #tpu.memory_space<vmem>>, %arg1: memref<2x2304xf32, #tpu.memory_space<vmem>>, %arg2: memref<32x1024xbf16, #tpu.memory_space<any>>, %arg3: memref<1024x512xbf16, #tpu.memory_space<any>>, %arg4: memref<512x256xbf16, #tpu.memory_space<any>>, %arg5: memref<640x128xbf16, #tpu.memory_space<any>>, %arg6: memref<16x128xf32, #tpu.memory_space<vmem>>, %arg7: memref<32x1024xbf16, #tpu.memory_space<vmem>>, %arg8: memref<1024x512xbf16, #tpu.memory_space<vmem>>, %arg9: memref<512x256xbf16, #tpu.memory_space<vmem>>, %arg10: memref<640x128xbf16, #tpu.memory_space<vmem>>, %arg11: memref<4x!tpu.dma_semaphore, #tpu.memory_space<semaphore_mem>>) attributes {dimension_semantics = [], scalar_prefetch = 0 : i64, scratch_operands = 5 : i64, tpu.core_type = #tpu.core_type<tc>} {
    %c0_i32 = arith.constant 0 : i32
    %0 = tpu.memref_slice %arg11[%c0_i32] : memref<4x!tpu.dma_semaphore, #tpu.memory_space<semaphore_mem>> -> memref<1x!tpu.dma_semaphore, #tpu.memory_space<semaphore_mem>>
    %1 = tpu.memref_squeeze %0 : memref<1x!tpu.dma_semaphore, #tpu.memory_space<semaphore_mem>> -> memref<!tpu.dma_semaphore, #tpu.memory_space<semaphore_mem>>
    tpu.enqueue_dma source(%arg2 : memref<32x1024xbf16, #tpu.memory_space<any>>) target(%arg7 : memref<32x1024xbf16, #tpu.memory_space<vmem>>) target_semaphore(%1 : memref<!tpu.dma_semaphore, #tpu.memory_space<semaphore_mem>>)
    %c1_i32 = arith.constant 1 : i32
    %2 = tpu.memref_slice %arg11[%c1_i32] : memref<4x!tpu.dma_semaphore, #tpu.memory_space<semaphore_mem>> -> memref<1x!tpu.dma_semaphore, #tpu.memory_space<semaphore_mem>>
    %3 = tpu.memref_squeeze %2 : memref<1x!tpu.dma_semaphore, #tpu.memory_space<semaphore_mem>> -> memref<!tpu.dma_semaphore, #tpu.memory_space<semaphore_mem>>
    tpu.enqueue_dma source(%arg3 : memref<1024x512xbf16, #tpu.memory_space<any>>) target(%arg8 : memref<1024x512xbf16, #tpu.memory_space<vmem>>) target_semaphore(%3 : memref<!tpu.dma_semaphore, #tpu.memory_space<semaphore_mem>>)
    %c2_i32 = arith.constant 2 : i32
    %4 = tpu.memref_slice %arg11[%c2_i32] : memref<4x!tpu.dma_semaphore, #tpu.memory_space<semaphore_mem>> -> memref<1x!tpu.dma_semaphore, #tpu.memory_space<semaphore_mem>>
    %5 = tpu.memref_squeeze %4 : memref<1x!tpu.dma_semaphore, #tpu.memory_space<semaphore_mem>> -> memref<!tpu.dma_semaphore, #tpu.memory_space<semaphore_mem>>
    tpu.enqueue_dma source(%arg4 : memref<512x256xbf16, #tpu.memory_space<any>>) target(%arg9 : memref<512x256xbf16, #tpu.memory_space<vmem>>) target_semaphore(%5 : memref<!tpu.dma_semaphore, #tpu.memory_space<semaphore_mem>>)
    %c3_i32 = arith.constant 3 : i32
    %6 = tpu.memref_slice %arg11[%c3_i32] : memref<4x!tpu.dma_semaphore, #tpu.memory_space<semaphore_mem>> -> memref<1x!tpu.dma_semaphore, #tpu.memory_space<semaphore_mem>>
    %7 = tpu.memref_squeeze %6 : memref<1x!tpu.dma_semaphore, #tpu.memory_space<semaphore_mem>> -> memref<!tpu.dma_semaphore, #tpu.memory_space<semaphore_mem>>
    tpu.enqueue_dma source(%arg5 : memref<640x128xbf16, #tpu.memory_space<any>>) target(%arg10 : memref<640x128xbf16, #tpu.memory_space<vmem>>) target_semaphore(%7 : memref<!tpu.dma_semaphore, #tpu.memory_space<semaphore_mem>>)
    %c0 = arith.constant 0 : index
    %c0_0 = arith.constant 0 : index
    %8 = vector.load %arg0[%c0, %c0_0] : memref<16x32xf32, #tpu.memory_space<vmem>>, vector<16x32xf32>
    %c0_i32_1 = arith.constant 0 : i32
    %9 = tpu.memref_slice %arg11[%c0_i32_1] : memref<4x!tpu.dma_semaphore, #tpu.memory_space<semaphore_mem>> -> memref<1x!tpu.dma_semaphore, #tpu.memory_space<semaphore_mem>>
    %10 = tpu.memref_squeeze %9 : memref<1x!tpu.dma_semaphore, #tpu.memory_space<semaphore_mem>> -> memref<!tpu.dma_semaphore, #tpu.memory_space<semaphore_mem>>
    tpu.wait_dma2 semaphore(%10 : memref<!tpu.dma_semaphore, #tpu.memory_space<semaphore_mem>>) src(%arg2 : memref<32x1024xbf16, #tpu.memory_space<any>>) dst(%arg7 : memref<32x1024xbf16, #tpu.memory_space<vmem>>)
    %c0_2 = arith.constant 0 : index
    %c0_3 = arith.constant 0 : index
    %11 = vector.load %arg7[%c0_2, %c0_3] : memref<32x1024xbf16, #tpu.memory_space<vmem>>, vector<32x1024xbf16>
    %12 = arith.truncf %8 : vector<16x32xf32> to vector<16x32xbf16>
    %cst = arith.constant dense<0.000000e+00> : vector<16x1024xf32>
    %13 = tpu.matmul %12, %11, %cst {dimension_numbers = #tpu.dot_dimension_numbers<[1], [0], [0], [1], [0, 0, 1, 1], [], []>} : vector<16x32xbf16>, vector<32x1024xbf16>, vector<16x1024xf32> -> vector<16x1024xf32>
    %c0_4 = arith.constant 0 : index
    %c0_5 = arith.constant 0 : index
    %14 = vector.load %arg1[%c0_4, %c0_5] : memref<2x2304xf32, #tpu.memory_space<vmem>>, vector<1x1024xf32>
    %15 = vector.broadcast %14 : vector<1x1024xf32> to vector<16x1024xf32>
    %16 = arith.mulf %13, %15 : vector<16x1024xf32>
    %c1 = arith.constant 1 : index
    %c0_6 = arith.constant 0 : index
    %17 = vector.load %arg1[%c1, %c0_6] : memref<2x2304xf32, #tpu.memory_space<vmem>>, vector<1x1024xf32>
    %18 = vector.broadcast %17 : vector<1x1024xf32> to vector<16x1024xf32>
    %19 = arith.addf %16, %18 : vector<16x1024xf32>
    %cst_7 = arith.constant 0.000000e+00 : f32
    %20 = vector.broadcast %cst_7 : f32 to vector<16x1024xf32>
    %21 = arith.maximumf %19, %20 : vector<16x1024xf32>
    %c1_i32_8 = arith.constant 1 : i32
    %22 = tpu.memref_slice %arg11[%c1_i32_8] : memref<4x!tpu.dma_semaphore, #tpu.memory_space<semaphore_mem>> -> memref<1x!tpu.dma_semaphore, #tpu.memory_space<semaphore_mem>>
    %23 = tpu.memref_squeeze %22 : memref<1x!tpu.dma_semaphore, #tpu.memory_space<semaphore_mem>> -> memref<!tpu.dma_semaphore, #tpu.memory_space<semaphore_mem>>
    tpu.wait_dma2 semaphore(%23 : memref<!tpu.dma_semaphore, #tpu.memory_space<semaphore_mem>>) src(%arg3 : memref<1024x512xbf16, #tpu.memory_space<any>>) dst(%arg8 : memref<1024x512xbf16, #tpu.memory_space<vmem>>)
    %c0_9 = arith.constant 0 : index
    %c0_10 = arith.constant 0 : index
    %24 = vector.load %arg8[%c0_9, %c0_10] : memref<1024x512xbf16, #tpu.memory_space<vmem>>, vector<1024x512xbf16>
    %25 = arith.truncf %21 : vector<16x1024xf32> to vector<16x1024xbf16>
    %cst_11 = arith.constant dense<0.000000e+00> : vector<16x512xf32>
    %26 = tpu.matmul %25, %24, %cst_11 {dimension_numbers = #tpu.dot_dimension_numbers<[1], [0], [0], [1], [0, 0, 1, 1], [], []>} : vector<16x1024xbf16>, vector<1024x512xbf16>, vector<16x512xf32> -> vector<16x512xf32>
    %c0_12 = arith.constant 0 : index
    %c1024 = arith.constant 1024 : index
    %27 = vector.load %arg1[%c0_12, %c1024] : memref<2x2304xf32, #tpu.memory_space<vmem>>, vector<1x512xf32>
    %28 = vector.broadcast %27 : vector<1x512xf32> to vector<16x512xf32>
    %29 = arith.mulf %26, %28 : vector<16x512xf32>
    %c1_13 = arith.constant 1 : index
    %c1024_14 = arith.constant 1024 : index
    %30 = vector.load %arg1[%c1_13, %c1024_14] : memref<2x2304xf32, #tpu.memory_space<vmem>>, vector<1x512xf32>
    %31 = vector.broadcast %30 : vector<1x512xf32> to vector<16x512xf32>
    %32 = arith.addf %29, %31 : vector<16x512xf32>
    %cst_15 = arith.constant 0.000000e+00 : f32
    %33 = vector.broadcast %cst_15 : f32 to vector<16x512xf32>
    %34 = arith.maximumf %32, %33 : vector<16x512xf32>
    %c2_i32_16 = arith.constant 2 : i32
    %35 = tpu.memref_slice %arg11[%c2_i32_16] : memref<4x!tpu.dma_semaphore, #tpu.memory_space<semaphore_mem>> -> memref<1x!tpu.dma_semaphore, #tpu.memory_space<semaphore_mem>>
    %36 = tpu.memref_squeeze %35 : memref<1x!tpu.dma_semaphore, #tpu.memory_space<semaphore_mem>> -> memref<!tpu.dma_semaphore, #tpu.memory_space<semaphore_mem>>
    tpu.wait_dma2 semaphore(%36 : memref<!tpu.dma_semaphore, #tpu.memory_space<semaphore_mem>>) src(%arg4 : memref<512x256xbf16, #tpu.memory_space<any>>) dst(%arg9 : memref<512x256xbf16, #tpu.memory_space<vmem>>)
    %c0_17 = arith.constant 0 : index
    %c0_18 = arith.constant 0 : index
    %37 = vector.load %arg9[%c0_17, %c0_18] : memref<512x256xbf16, #tpu.memory_space<vmem>>, vector<512x256xbf16>
    %38 = arith.truncf %34 : vector<16x512xf32> to vector<16x512xbf16>
    %cst_19 = arith.constant dense<0.000000e+00> : vector<16x256xf32>
    %39 = tpu.matmul %38, %37, %cst_19 {dimension_numbers = #tpu.dot_dimension_numbers<[1], [0], [0], [1], [0, 0, 1, 1], [], []>} : vector<16x512xbf16>, vector<512x256xbf16>, vector<16x256xf32> -> vector<16x256xf32>
    %c0_20 = arith.constant 0 : index
    %c1536 = arith.constant 1536 : index
    %40 = vector.load %arg1[%c0_20, %c1536] : memref<2x2304xf32, #tpu.memory_space<vmem>>, vector<1x256xf32>
    %41 = vector.broadcast %40 : vector<1x256xf32> to vector<16x256xf32>
    %42 = arith.mulf %39, %41 : vector<16x256xf32>
    %c1_21 = arith.constant 1 : index
    %c1536_22 = arith.constant 1536 : index
    %43 = vector.load %arg1[%c1_21, %c1536_22] : memref<2x2304xf32, #tpu.memory_space<vmem>>, vector<1x256xf32>
    %44 = vector.broadcast %43 : vector<1x256xf32> to vector<16x256xf32>
    %45 = arith.addf %42, %44 : vector<16x256xf32>
    %cst_23 = arith.constant 0.000000e+00 : f32
    %46 = vector.broadcast %cst_23 : f32 to vector<16x256xf32>
    %47 = arith.maximumf %45, %46 : vector<16x256xf32>
    %c3_i32_24 = arith.constant 3 : i32
    %48 = tpu.memref_slice %arg11[%c3_i32_24] : memref<4x!tpu.dma_semaphore, #tpu.memory_space<semaphore_mem>> -> memref<1x!tpu.dma_semaphore, #tpu.memory_space<semaphore_mem>>
    %49 = tpu.memref_squeeze %48 : memref<1x!tpu.dma_semaphore, #tpu.memory_space<semaphore_mem>> -> memref<!tpu.dma_semaphore, #tpu.memory_space<semaphore_mem>>
    tpu.wait_dma2 semaphore(%49 : memref<!tpu.dma_semaphore, #tpu.memory_space<semaphore_mem>>) src(%arg5 : memref<640x128xbf16, #tpu.memory_space<any>>) dst(%arg10 : memref<640x128xbf16, #tpu.memory_space<vmem>>)
    %c0_25 = arith.constant 0 : index
    %c0_26 = arith.constant 0 : index
    %50 = vector.load %arg10[%c0_25, %c0_26] : memref<640x128xbf16, #tpu.memory_space<vmem>>, vector<256x128xbf16>
    %51 = arith.truncf %47 : vector<16x256xf32> to vector<16x256xbf16>
    %cst_27 = arith.constant dense<0.000000e+00> : vector<16x128xf32>
    %52 = tpu.matmul %51, %50, %cst_27 {dimension_numbers = #tpu.dot_dimension_numbers<[1], [0], [0], [1], [0, 0, 1, 1], [], []>} : vector<16x256xbf16>, vector<256x128xbf16>, vector<16x128xf32> -> vector<16x128xf32>
    %c0_28 = arith.constant 0 : index
    %c1792 = arith.constant 1792 : index
    %53 = vector.load %arg1[%c0_28, %c1792] : memref<2x2304xf32, #tpu.memory_space<vmem>>, vector<1x128xf32>
    %54 = vector.broadcast %53 : vector<1x128xf32> to vector<16x128xf32>
    %55 = arith.mulf %52, %54 : vector<16x128xf32>
    %c1_29 = arith.constant 1 : index
    %c1792_30 = arith.constant 1792 : index
    %56 = vector.load %arg1[%c1_29, %c1792_30] : memref<2x2304xf32, #tpu.memory_space<vmem>>, vector<1x128xf32>
    %57 = vector.broadcast %56 : vector<1x128xf32> to vector<16x128xf32>
    %58 = arith.addf %55, %57 : vector<16x128xf32>
    %cst_31 = arith.constant 0.000000e+00 : f32
    %59 = vector.broadcast %cst_31 : f32 to vector<16x128xf32>
    %60 = arith.maximumf %58, %59 : vector<16x128xf32>
    %c256 = arith.constant 256 : index
    %c0_32 = arith.constant 0 : index
    %61 = vector.load %arg10[%c256, %c0_32] : memref<640x128xbf16, #tpu.memory_space<vmem>>, vector<128x128xbf16>
    %62 = arith.truncf %60 : vector<16x128xf32> to vector<16x128xbf16>
    %cst_33 = arith.constant dense<0.000000e+00> : vector<16x128xf32>
    %63 = tpu.matmul %62, %61, %cst_33 {dimension_numbers = #tpu.dot_dimension_numbers<[1], [0], [0], [1], [0, 0, 1, 1], [], []>} : vector<16x128xbf16>, vector<128x128xbf16>, vector<16x128xf32> -> vector<16x128xf32>
    %c0_34 = arith.constant 0 : index
    %c1920 = arith.constant 1920 : index
    %64 = vector.load %arg1[%c0_34, %c1920] : memref<2x2304xf32, #tpu.memory_space<vmem>>, vector<1x128xf32>
    %65 = vector.broadcast %64 : vector<1x128xf32> to vector<16x128xf32>
    %66 = arith.mulf %63, %65 : vector<16x128xf32>
    %c1_35 = arith.constant 1 : index
    %c1920_36 = arith.constant 1920 : index
    %67 = vector.load %arg1[%c1_35, %c1920_36] : memref<2x2304xf32, #tpu.memory_space<vmem>>, vector<1x128xf32>
    %68 = vector.broadcast %67 : vector<1x128xf32> to vector<16x128xf32>
    %69 = arith.addf %66, %68 : vector<16x128xf32>
    %cst_37 = arith.constant 0.000000e+00 : f32
    %70 = vector.broadcast %cst_37 : f32 to vector<16x128xf32>
    %71 = arith.maximumf %69, %70 : vector<16x128xf32>
    %c384 = arith.constant 384 : index
    %c0_38 = arith.constant 0 : index
    %72 = vector.load %arg10[%c384, %c0_38] : memref<640x128xbf16, #tpu.memory_space<vmem>>, vector<128x128xbf16>
    %73 = arith.truncf %71 : vector<16x128xf32> to vector<16x128xbf16>
    %cst_39 = arith.constant dense<0.000000e+00> : vector<16x128xf32>
    %74 = tpu.matmul %73, %72, %cst_39 {dimension_numbers = #tpu.dot_dimension_numbers<[1], [0], [0], [1], [0, 0, 1, 1], [], []>} : vector<16x128xbf16>, vector<128x128xbf16>, vector<16x128xf32> -> vector<16x128xf32>
    %c0_40 = arith.constant 0 : index
    %c2048 = arith.constant 2048 : index
    %75 = vector.load %arg1[%c0_40, %c2048] : memref<2x2304xf32, #tpu.memory_space<vmem>>, vector<1x128xf32>
    %76 = vector.broadcast %75 : vector<1x128xf32> to vector<16x128xf32>
    %77 = arith.mulf %74, %76 : vector<16x128xf32>
    %c1_41 = arith.constant 1 : index
    %c2048_42 = arith.constant 2048 : index
    %78 = vector.load %arg1[%c1_41, %c2048_42] : memref<2x2304xf32, #tpu.memory_space<vmem>>, vector<1x128xf32>
    %79 = vector.broadcast %78 : vector<1x128xf32> to vector<16x128xf32>
    %80 = arith.addf %77, %79 : vector<16x128xf32>
    %cst_43 = arith.constant 0.000000e+00 : f32
    %81 = vector.broadcast %cst_43 : f32 to vector<16x128xf32>
    %82 = arith.maximumf %80, %81 : vector<16x128xf32>
    %c512 = arith.constant 512 : index
    %c0_44 = arith.constant 0 : index
    %83 = vector.load %arg10[%c512, %c0_44] : memref<640x128xbf16, #tpu.memory_space<vmem>>, vector<128x128xbf16>
    %84 = arith.truncf %82 : vector<16x128xf32> to vector<16x128xbf16>
    %cst_45 = arith.constant dense<0.000000e+00> : vector<16x128xf32>
    %85 = tpu.matmul %84, %83, %cst_45 {dimension_numbers = #tpu.dot_dimension_numbers<[1], [0], [0], [1], [0, 0, 1, 1], [], []>} : vector<16x128xbf16>, vector<128x128xbf16>, vector<16x128xf32> -> vector<16x128xf32>
    %c0_46 = arith.constant 0 : index
    %c2176 = arith.constant 2176 : index
    %86 = vector.load %arg1[%c0_46, %c2176] : memref<2x2304xf32, #tpu.memory_space<vmem>>, vector<1x128xf32>
    %87 = vector.broadcast %86 : vector<1x128xf32> to vector<16x128xf32>
    %88 = arith.mulf %85, %87 : vector<16x128xf32>
    %c1_47 = arith.constant 1 : index
    %c2176_48 = arith.constant 2176 : index
    %89 = vector.load %arg1[%c1_47, %c2176_48] : memref<2x2304xf32, #tpu.memory_space<vmem>>, vector<1x128xf32>
    %90 = vector.broadcast %89 : vector<1x128xf32> to vector<16x128xf32>
    %91 = arith.addf %88, %90 : vector<16x128xf32>
    %c0_49 = arith.constant 0 : index
    %c0_50 = arith.constant 0 : index
    %92 = vector.load %arg6[%c0_49, %c0_50] : memref<16x128xf32, #tpu.memory_space<vmem>>, vector<16x128xf32>
    tpu.vector_store %arg6[%c0_49, %c0_50], %91 {strides = array<i32>} : memref<16x128xf32, #tpu.memory_space<vmem>>, vector<16x128xf32>,
    return
  }
}

</mosaic_0001>

<llo_original>
// kernel: mlp_forward.1
$region0: #{mlp_forward.1}
  #allocation0 [shape = 'u32[]', space=smem, size = 0x4, offset = 0x4, fixed_abs, tag = 'smem constant byte address 0x4 - core index']
  #allocation1 [shape = 'u32[144,128]{1,0:T(1,128)}', space=vmem, size = 0x12000, scoped, tag = 'internal scratch']
  #allocation2 [shape = 'bf16[32,1024]{1,0:T(16,128)(2,1)}', space=vmem, size = 0x10000, scoped, tag = 'scratch operand']
  #allocation3 [shape = 'bf16[1024,512]{1,0:T(16,128)(2,1)}', space=vmem, size = 0x100000, scoped, tag = 'scratch operand']
  #allocation4 [shape = 'bf16[512,256]{1,0:T(16,128)(2,1)}', space=vmem, size = 0x40000, scoped, tag = 'scratch operand']
  #allocation5 [shape = 'bf16[640,128]{1,0:T(16,128)(2,1)}', space=vmem, size = 0x28000, scoped, tag = 'scratch operand']
  #allocation6 [shape = 's32[4]{0}', space=sflag, size = 0x10, scoped, tag = 'scratch operand']
  #allocation9 [shape = 's32[]', space=sflag, size = 0x4, offset = 0, fixed_abs, tag = 'sflag constant byte address 0x0 - dummy sync flag']
  #allocation11 [shape = 's32[]', space=sflag, size = 0x4, offset = 0, fixed_abs, tag = 'sflag constant byte address 0x0 - dummy sync flag']
  #allocation13 [shape = 's32[]', space=sflag, size = 0x4, offset = 0, fixed_abs, tag = 'sflag constant byte address 0x0 - dummy sync flag']
  #allocation15 [shape = 's32[]', space=sflag, size = 0x4, offset = 0, fixed_abs, tag = 'sflag constant byte address 0x0 - dummy sync flag']
  #allocation16 [shape = 's32[]', space=sflag, size = 0x4, offset = 0, fixed_abs, tag = 'sflag constant byte address 0x0 - dummy sync flag']
  #allocation17 [shape = 'u32[]', space=smem, size = 0x4, offset = 0x44, fixed_abs, tag = 'smem constant byte address 0x44 - assertion arg 0']
  #allocation18 [shape = 'u32[]', space=smem, size = 0x4, offset = 0x48, fixed_abs, tag = 'smem constant byte address 0x48 - assertion arg 1']
  %s0 = inlined_call_operand.vmem [shape: f32[16,32], index: 0, kind: input, shape index: {}]
  %s1 = inlined_call_operand.vmem [shape: f32[2,2304], index: 1, kind: input, shape index: {}]
  %s2 = inlined_call_operand.hbm [shape: bf16[32,1024], index: 2, kind: input, shape index: {}]
  %s3 = inlined_call_operand.hbm [shape: bf16[1024,512], index: 3, kind: input, shape index: {}]
  %s4 = inlined_call_operand.hbm [shape: bf16[512,256], index: 4, kind: input, shape index: {}]
  %s5 = inlined_call_operand.hbm [shape: bf16[640,128], index: 5, kind: input, shape index: {}]
  %s6 = inlined_call_operand.hbm [shape: f32[16,128], index: 6, kind: output, shape index: {}]
  %s7 = sld [smem:[#allocation0]]
  $region22: #{mlp_forward.1} parent=0
    _
  %s9 = ssub.s32 1, %s7
  %s10 = scalar_select 0, %s9, %s7
  $region1: #{mlp_forward.1} parent=0
    #allocation7 [shape = 'u8[8192]{0}', space=vmem, size = 0x2000, scoped, tag = 'output window, operand 0, single buffered']
    #allocation8 [shape = 's32[1]{0}', space=sflag, size = 0x4, scoped, tag = 'scoped memory for mlp_forward.1']
    #allocation10 [shape = 'u32[9]{0}', space=smem, size = 0x24, scoped, tag = 'DMA stride descriptor']
    #allocation12 [shape = 'u32[9]{0}', space=smem, size = 0x24, scoped, tag = 'DMA stride descriptor']
    #allocation14 [shape = 'u32[9]{0}', space=smem, size = 0x24, scoped, tag = 'DMA stride descriptor']
    %11 = vsyncpa [#allocation8], 0
    // Predicated region
    $region2: #{mlp_forward.1} parent=1 // pred_check
      _
    $region3: #{mlp_forward.1} parent=1 // pred_check_branch
      %13 = sbr.rel (0) target = $region5
    $region4: #{mlp_forward.1} parent=1 // pred_region
      _
    $region5: #{mlp_forward.1} parent=1 // pred_fallthru
      _
    // Predicated region
    $region6: #{mlp_forward.1} parent=1 // pred_check
      _
    $region7: #{mlp_forward.1} parent=1 // pred_check_branch
      %15 = sbr.rel (0) target = $region9
    $region8: #{mlp_forward.1} parent=1 // pred_region
      _
    $region9: #{mlp_forward.1} parent=1 // pred_fallthru
      _
    %s18 = sshll.u32 1, 14
    %s19 = sxor.u32 4294967295, %s18
    %s21 = sld [smem:[#allocation0]]
    %s22 = sadd.s32 2, %s21
    %s24 = sshll.u32 7, 26
    %s25 = sxor.u32 4294967295, %s24
    %s26 = sand.u32 0, %s25
    %s27 = sshll.u32 %s22, 26
    %s28 = sor.u32 %s26, %s27
    %s29 = sshll.u32 [#allocation2], 4
    %s30 = int_to_ptr.vmem [resolvable:$true] %s29
    %33 = sst [smem:[#allocation10]] 1024
    %s34 = scalar_lea.smem [#allocation10], 1
    %35 = sst [smem:[%s34]] 1024
    %s36 = scalar_lea.smem [#allocation10], 2
    %37 = sst [smem:[%s36]] 8
    %s38 = scalar_lea.smem [#allocation10], 3
    %39 = sst [smem:[%s38]] 64
    %s40 = scalar_lea.smem [#allocation10], 4
    %41 = sst [smem:[%s40]] 128
    %s42 = scalar_lea.smem [#allocation10], 5
    %43 = sst [smem:[%s42]] 2
    %s44 = scalar_lea.smem [#allocation10], 6
    %45 = sst [smem:[%s44]] 512
    %s46 = scalar_lea.smem [#allocation10], 7
    %47 = sst [smem:[%s46]] 64
    %s48 = scalar_lea.smem [#allocation10], 8
    %49 = sst [smem:[%s48]] 4
    %51 = dma.general %s2, 2048, %s30, [#allocation6], [#allocation9], [#allocation10], %s28, 0
    %s52 = scalar_lea.sflag [#allocation6], 1
    %s54 = sshll.u32 1, 14
    %s55 = sxor.u32 4294967295, %s54
    %s57 = sadd.s32 2, %s21
    %s59 = sshll.u32 7, 26
    %s60 = sxor.u32 4294967295, %s59
    %s61 = sand.u32 0, %s60
    %s62 = sshll.u32 %s57, 26
    %s63 = sor.u32 %s61, %s62
    %s64 = sshll.u32 [#allocation3], 4
    %s65 = int_to_ptr.vmem [resolvable:$true] %s64
    %68 = sst [smem:[#allocation12]] 512
    %s69 = scalar_lea.smem [#allocation12], 1
    %70 = sst [smem:[%s69]] 512
    %s71 = scalar_lea.smem [#allocation12], 2
    %72 = sst [smem:[%s71]] 4
    %s73 = scalar_lea.smem [#allocation12], 3
    %74 = sst [smem:[%s73]] 64
    %s75 = scalar_lea.smem [#allocation12], 4
    %76 = sst [smem:[%s75]] 128
    %s77 = scalar_lea.smem [#allocation12], 5
    %78 = sst [smem:[%s77]] 2
    %s79 = scalar_lea.smem [#allocation12], 6
    %80 = sst [smem:[%s79]] 256
    %s81 = scalar_lea.smem [#allocation12], 7
    %82 = sst [smem:[%s81]] 64
    %s83 = scalar_lea.smem [#allocation12], 8
    %84 = sst [smem:[%s83]] 4
    %86 = dma.general %s3, 32768, %s65, %s52, [#allocation11], [#allocation12], %s63, 0
    %s87 = scalar_lea.sflag [#allocation6], 2
    %s89 = sshll.u32 1, 14
    %s90 = sxor.u32 4294967295, %s89
    %s92 = sadd.s32 2, %s21
    %s94 = sshll.u32 7, 26
    %s95 = sxor.u32 4294967295, %s94
    %s96 = sand.u32 0, %s95
    %s97 = sshll.u32 %s92, 26
    %s98 = sor.u32 %s96, %s97
    %s99 = sshll.u32 [#allocation4], 4
    %s100 = int_to_ptr.vmem [resolvable:$true] %s99
    %103 = sst [smem:[#allocation14]] 256
    %s104 = scalar_lea.smem [#allocation14], 1
    %105 = sst [smem:[%s104]] 256
    %s106 = scalar_lea.smem [#allocation14], 2
    %107 = sst [smem:[%s106]] 2
    %s108 = scalar_lea.smem [#allocation14], 3
    %109 = sst [smem:[%s108]] 64
    %s110 = scalar_lea.smem [#allocation14], 4
    %111 = sst [smem:[%s110]] 128
    %s112 = scalar_lea.smem [#allocation14], 5
    %113 = sst [smem:[%s112]] 2
    %s114 = scalar_lea.smem [#allocation14], 6
    %115 = sst [smem:[%s114]] 128
    %s116 = scalar_lea.smem [#allocation14], 7
    %117 = sst [smem:[%s116]] 64
    %s118 = scalar_lea.smem [#allocation14], 8
    %119 = sst [smem:[%s118]] 4
    %121 = dma.general %s4, 8192, %s100, %s87, [#allocation13], [#allocation14], %s98, 0
    %s122 = scalar_lea.sflag [#allocation6], 3
    // Predicated region
    $region10: #{mlp_forward.1} parent=1 // pred_check
      _
    $region11: #{mlp_forward.1} parent=1 // pred_check_branch
      %124 = sbr.rel target = $region13
    $region12: #{mlp_forward.1} parent=1 // pred_region
      %125 = sst [smem:[#allocation17]] [#allocation16]
      %126 = sst [smem:[#allocation18]] [#allocation15]
    $region13: #{mlp_forward.1} parent=1 // pred_fallthru
      _
    %128 = shalt.err (0)
    %s130 = sshll.u32 [#allocation5], 4
    %s131 = int_to_ptr.vmem [resolvable:$true] %s130
    %133 = dma.hbm_to_vmem [thread:$0]  %s5, 5120, %s131, %s122
    %v134 = vld [vmem:[%s0] sm:$0xff]
    %v135 = vld [vmem:[%s0 + $0x8] sm:$0xff]
    %s136 = smul.u32 4, 4
    %s137 = smul.u32 %s136, 8
    %s138 = sshll.u32 %s137, 4
    %139 = dma.done [#allocation6], %s138
    %v140 = vld [vmem:[#allocation2] sm:$0xff]
    %v141 = vld [vmem:[#allocation2 + $0x8] sm:$0xff]
    %v142 = vld [vmem:[#allocation2 + $0x10] sm:$0xff]
    %v143 = vld [vmem:[#allocation2 + $0x18] sm:$0xff]
    %v144 = vld [vmem:[#allocation2 + $0x20] sm:$0xff]
    %v145 = vld [vmem:[#allocation2 + $0x28] sm:$0xff]
    %v146 = vld [vmem:[#allocation2 + $0x30] sm:$0xff]
    %v147 = vld [vmem:[#allocation2 + $0x38] sm:$0xff]
    %v148 = vld [vmem:[#allocation2 + $0x40] sm:$0xff]
    %v149 = vld [vmem:[#allocation2 + $0x48] sm:$0xff]
    %v150 = vld [vmem:[#allocation2 + $0x50] sm:$0xff]
    %v151 = vld [vmem:[#allocation2 + $0x58] sm:$0xff]
    %v152 = vld [vmem:[#allocation2 + $0x60] sm:$0xff]
    %v153 = vld [vmem:[#allocation2 + $0x68] sm:$0xff]
    %v154 = vld [vmem:[#allocation2 + $0x70] sm:$0xff]
    %v155 = vld [vmem:[#allocation2 + $0x78] sm:$0xff]
    %v156 = vpack.c.bf16 %v135, %v134
    %vm157 = vcmask 261120
    %v159 = vsel %vm157, %v156, 0
    %161 = vmatprep.subr.bf16.mxu0 %v141
    %162 = vmatpush1.bf16.msra.mxu0 %v140
    %163 = vmatprep.subr.bf16.mxu0 %v149
    %164 = vmatpush1.bf16.msra.mxu0 %v148
    %165 = vmatprep.subr.bf16.mxu0 0
    %166 = vmatpush1.bf16.msra.mxu0 0
    %167 = vmatprep.subr.bf16.mxu0 0
    %168 = vmatpush1.bf16.msra.mxu0 0
    %169 = vmatprep.subr.bf16.mxu0 0
    %170 = vmatpush1.bf16.msra.mxu0 0
    %171 = vmatprep.subr.bf16.mxu0 0
    %172 = vmatpush1.bf16.msra.mxu0 0
    %173 = vmatprep.subr.bf16.mxu0 0
    %174 = vmatpush1.bf16.msra.mxu0 0
    %175 = vmatprep.subr.bf16.mxu0 0
    %176 = vmatpush1.bf16.msra.mxu0 0
    %177 = vmatprep.subr.bf16.mxu0 0
    %178 = vmatpush1.bf16.msra.mxu0 0
    %179 = vmatprep.subr.bf16.mxu0 0
    %180 = vmatpush1.bf16.msra.mxu0 0
    %181 = vmatprep.subr.bf16.mxu0 0
    %182 = vmatpush1.bf16.msra.mxu0 0
    %183 = vmatprep.subr.bf16.mxu0 0
    %184 = vmatpush1.bf16.msra.mxu0 0
    %185 = vmatprep.subr.bf16.mxu0 0
    %186 = vmatpush1.bf16.msra.mxu0 0
    %187 = vmatprep.subr.bf16.mxu0 0
    %188 = vmatpush1.bf16.msra.mxu0 0
    %189 = vmatprep.subr.bf16.mxu0 0
    %190 = vmatpush1.bf16.msra.mxu0 0
    %191 = vmatprep.subr.bf16.mxu0 0
    %192 = vmatpush1.bf16.msra.mxu0 0
    %193 = vmatprep.mubr.bf16.mxu0 0
    %194 = vmatmul.mubr.bf16.gmra.mrb[0].mxu0 %v159
    %v195 = vpop.f32.mrb[0].mxu0
    %v196 = vadd.f32 0.0, %v195
    %v197 = vpop.f32.mrb[0].mxu0
    %v198 = vadd.f32 0.0, %v197
    %v199 = vpop.f32.mrb[0].mxu0
    %v200 = vadd.f32 0.0, %v199
    %v201 = vpop.f32.mrb[0].mxu0
    %v202 = vadd.f32 0.0, %v201
    %203 = vdwg.mxu0
    %204 = vmatprep.subr.bf16.mxu0 %v143
    %205 = vmatpush1.bf16.msra.mxu0 %v142
    %206 = vmatprep.subr.bf16.mxu0 %v151
    %207 = vmatpush1.bf16.msra.mxu0 %v150
    %208 = vmatprep.subr.bf16.mxu0 0
    %209 = vmatpush1.bf16.msra.mxu0 0
    %210 = vmatprep.subr.bf16.mxu0 0
    %211 = vmatpush1.bf16.msra.mxu0 0
    %212 = vmatprep.subr.bf16.mxu0 0
    %213 = vmatpush1.bf16.msra.mxu0 0
    %214 = vmatprep.subr.bf16.mxu0 0
    %215 = vmatpush1.bf16.msra.mxu0 0
    %216 = vmatprep.subr.bf16.mxu0 0
    %217 = vmatpush1.bf16.msra.mxu0 0
    %218 = vmatprep.subr.bf16.mxu0 0
    %219 = vmatpush1.bf16.msra.mxu0 0
    %220 = vmatprep.subr.bf16.mxu0 0
    %221 = vmatpush1.bf16.msra.mxu0 0
    %222 = vmatprep.subr.bf16.mxu0 0
    %223 = vmatpush1.bf16.msra.mxu0 0
    %224 = vmatprep.subr.bf16.mxu0 0
    %225 = vmatpush1.bf16.msra.mxu0 0
    %226 = vmatprep.subr.bf16.mxu0 0
    %227 = vmatpush1.bf16.msra.mxu0 0
    %228 = vmatprep.subr.bf16.mxu0 0
    %229 = vmatpush1.bf16.msra.mxu0 0
    %230 = vmatprep.subr.bf16.mxu0 0
    %231 = vmatpush1.bf16.msra.mxu0 0
    %232 = vmatprep.subr.bf16.mxu0 0
    %233 = vmatpush1.bf16.msra.mxu0 0
    %234 = vmatprep.subr.bf16.mxu0 0
    %235 = vmatpush1.bf16.msra.mxu0 0
    %236 = vmatprep.mubr.bf16.mxu0 0
    %237 = vmatmul.mubr.bf16.gmra.mrb[0].mxu0 %v159
    %v238 = vpop.f32.mrb[0].mxu0
    %v239 = vadd.f32 0.0, %v238
    %v240 = vpop.f32.mrb[0].mxu0
    %v241 = vadd.f32 0.0, %v240
    %v242 = vpop.f32.mrb[0].mxu0
    %v243 = vadd.f32 0.0, %v242
    %v244 = vpop.f32.mrb[0].mxu0
    %v245 = vadd.f32 0.0, %v244
    %246 = vdwg.mxu0
    %247 = vmatprep.subr.bf16.mxu0 %v145
    %248 = vmatpush1.bf16.msra.mxu0 %v144
    %249 = vmatprep.subr.bf16.mxu0 %v153
    %250 = vmatpush1.bf16.msra.mxu0 %v152
    %251 = vmatprep.subr.bf16.mxu0 0
    %252 = vmatpush1.bf16.msra.mxu0 0
    %253 = vmatprep.subr.bf16.mxu0 0
    %254 = vmatpush1.bf16.msra.mxu0 0
    %255 = vmatprep.subr.bf16.mxu0 0
    %256 = vmatpush1.bf16.msra.mxu0 0
    %257 = vmatprep.subr.bf16.mxu0 0
    %258 = vmatpush1.bf16.msra.mxu0 0
    %259 = vmatprep.subr.bf16.mxu0 0
    %260 = vmatpush1.bf16.msra.mxu0 0
    %261 = vmatprep.subr.bf16.mxu0 0
    %262 = vmatpush1.bf16.msra.mxu0 0
    %263 = vmatprep.subr.bf16.mxu0 0
    %264 = vmatpush1.bf16.msra.mxu0 0
    %265 = vmatprep.subr.bf16.mxu0 0
    %266 = vmatpush1.bf16.msra.mxu0 0
    %267 = vmatprep.subr.bf16.mxu0 0
    %268 = vmatpush1.bf16.msra.mxu0 0
    %269 = vmatprep.subr.bf16.mxu0 0
    %270 = vmatpush1.bf16.msra.mxu0 0
    %271 = vmatprep.subr.bf16.mxu0 0
    %272 = vmatpush1.bf16.msra.mxu0 0
    %273 = vmatprep.subr.bf16.mxu0 0
    %274 = vmatpush1.bf16.msra.mxu0 0
    %275 = vmatprep.subr.bf16.mxu0 0
    %276 = vmatpush1.bf16.msra.mxu0 0
    %277 = vmatprep.subr.bf16.mxu0 0
    %278 = vmatpush1.bf16.msra.mxu0 0
    %279 = vmatprep.mubr.bf16.mxu0 0
    %280 = vmatmul.mubr.bf16.gmra.mrb[0].mxu0 %v159
    %v281 = vpop.f32.mrb[0].mxu0
    %v282 = vadd.f32 0.0, %v281
    %v283 = vpop.f32.mrb[0].mxu0
    %v284 = vadd.f32 0.0, %v283
    %v285 = vpop.f32.mrb[0].mxu0
    %v286 = vadd.f32 0.0, %v285
    %v287 = vpop.f32.mrb[0].mxu0
    %v288 = vadd.f32 0.0, %v287
    %289 = vdwg.mxu0
    %290 = vmatprep.subr.bf16.mxu0 %v147
    %291 = vmatpush1.bf16.msra.mxu0 %v146
    %292 = vmatprep.subr.bf16.mxu0 %v155
    %293 = vmatpush1.bf16.msra.mxu0 %v154
    %294 = vmatprep.subr.bf16.mxu0 0
    %295 = vmatpush1.bf16.msra.mxu0 0
    %296 = vmatprep.subr.bf16.mxu0 0
    %297 = vmatpush1.bf16.msra.mxu0 0
    %298 = vmatprep.subr.bf16.mxu0 0
    %299 = vmatpush1.bf16.msra.mxu0 0
    %300 = vmatprep.subr.bf16.mxu0 0
    %301 = vmatpush1.bf16.msra.mxu0 0
    %302 = vmatprep.subr.bf16.mxu0 0
    %303 = vmatpush1.bf16.msra.mxu0 0
    %304 = vmatprep.subr.bf16.mxu0 0
    %305 = vmatpush1.bf16.msra.mxu0 0
    %306 = vmatprep.subr.bf16.mxu0 0
    %307 = vmatpush1.bf16.msra.mxu0 0
    %308 = vmatprep.subr.bf16.mxu0 0
    %309 = vmatpush1.bf16.msra.mxu0 0
    %310 = vmatprep.subr.bf16.mxu0 0
    %311 = vmatpush1.bf16.msra.mxu0 0
    %312 = vmatprep.subr.bf16.mxu0 0
    %313 = vmatpush1.bf16.msra.mxu0 0
    %314 = vmatprep.subr.bf16.mxu0 0
    %315 = vmatpush1.bf16.msra.mxu0 0
    %316 = vmatprep.subr.bf16.mxu0 0
    %317 = vmatpush1.bf16.msra.mxu0 0
    %318 = vmatprep.subr.bf16.mxu0 0
    %319 = vmatpush1.bf16.msra.mxu0 0
    %320 = vmatprep.subr.bf16.mxu0 0
    %321 = vmatpush1.bf16.msra.mxu0 0
    %322 = vmatprep.mubr.bf16.mxu0 0
    %323 = vmatmul.mubr.bf16.gmra.mrb[0].mxu0 %v159
    %v324 = vpop.f32.mrb[0].mxu0
    %v325 = vadd.f32 0.0, %v324
    %v326 = vpop.f32.mrb[0].mxu0
    %v327 = vadd.f32 0.0, %v326
    %v328 = vpop.f32.mrb[0].mxu0
    %v329 = vadd.f32 0.0, %v328
    %v330 = vpop.f32.mrb[0].mxu0
    %v331 = vadd.f32 0.0, %v330
    %332 = vdwg.mxu0
    %v333 = vld [vmem:[%s1] ss:$2 sm:$0xff]
    %v335 = vlaneseq
    %v336 = vshrl.u32 %v335, 7
    %v337 = vsub.s32 0, %v336
    %v338 = vrot.slane %v333, %v337
    %v339 = vlaneseq
    %v340 = vshrl.u32 %v339, 7
    %v341 = vsub.s32 1, %v340
    %v342 = vrot.slane %v333, %v341
    %v343 = vlaneseq
    %v344 = vshrl.u32 %v343, 7
    %v345 = vsub.s32 2, %v344
    %v346 = vrot.slane %v333, %v345
    %v347 = vlaneseq
    %v348 = vshrl.u32 %v347, 7
    %v349 = vsub.s32 3, %v348
    %v350 = vrot.slane %v333, %v349
    %v351 = vlaneseq
    %v352 = vshrl.u32 %v351, 7
    %v353 = vsub.s32 4, %v352
    %v354 = vrot.slane %v333, %v353
    %v355 = vlaneseq
    %v356 = vshrl.u32 %v355, 7
    %v357 = vsub.s32 5, %v356
    %v358 = vrot.slane %v333, %v357
    %v359 = vlaneseq
    %v360 = vshrl.u32 %v359, 7
    %v361 = vsub.s32 6, %v360
    %v362 = vrot.slane %v333, %v361
    %v363 = vlaneseq
    %v364 = vshrl.u32 %v363, 7
    %v365 = vsub.s32 7, %v364
    %v366 = vrot.slane %v333, %v365
    %v375 = vmul.f32 %v196, %v338
    %v376 = vmul.f32 %v198, %v342
    %v377 = vmul.f32 %v239, %v346
    %v378 = vmul.f32 %v241, %v350
    %v379 = vmul.f32 %v282, %v354
    %v380 = vmul.f32 %v284, %v358
    %v381 = vmul.f32 %v325, %v362
    %v382 = vmul.f32 %v327, %v366
    %v383 = vmul.f32 %v200, %v338
    %v384 = vmul.f32 %v202, %v342
    %v385 = vmul.f32 %v243, %v346
    %v386 = vmul.f32 %v245, %v350
    %v387 = vmul.f32 %v286, %v354
    %v388 = vmul.f32 %v288, %v358
    %v389 = vmul.f32 %v329, %v362
    %v390 = vmul.f32 %v331, %v366
    %s391 = scalar_lea.vmem %s1, 1
    %v392 = vld [vmem:[%s391] ss:$2 sm:$0xff]
    %v394 = vlaneseq
    %v395 = vshrl.u32 %v394, 7
    %v396 = vsub.s32 0, %v395
    %v397 = vrot.slane %v392, %v396
    %v398 = vlaneseq
    %v399 = vshrl.u32 %v398, 7
    %v400 = vsub.s32 1, %v399
    %v401 = vrot.slane %v392, %v400
    %v402 = vlaneseq
    %v403 = vshrl.u32 %v402, 7
    %v404 = vsub.s32 2, %v403
    %v405 = vrot.slane %v392, %v404
    %v406 = vlaneseq
    %v407 = vshrl.u32 %v406, 7
    %v408 = vsub.s32 3, %v407
    %v409 = vrot.slane %v392, %v408
    %v410 = vlaneseq
    %v411 = vshrl.u32 %v410, 7
    %v412 = vsub.s32 4, %v411
    %v413 = vrot.slane %v392, %v412
    %v414 = vlaneseq
    %v415 = vshrl.u32 %v414, 7
    %v416 = vsub.s32 5, %v415
    %v417 = vrot.slane %v392, %v416
    %v418 = vlaneseq
    %v419 = vshrl.u32 %v418, 7
    %v420 = vsub.s32 6, %v419
    %v421 = vrot.slane %v392, %v420
    %v422 = vlaneseq
    %v423 = vshrl.u32 %v422, 7
    %v424 = vsub.s32 7, %v423
    %v425 = vrot.slane %v392, %v424
    %v434 = vadd.f32 %v375, %v397
    %v435 = vadd.f32 %v376, %v401
    %v436 = vadd.f32 %v377, %v405
    %v437 = vadd.f32 %v378, %v409
    %v438 = vadd.f32 %v379, %v413
    %v439 = vadd.f32 %v380, %v417
    %v440 = vadd.f32 %v381, %v421
    %v441 = vadd.f32 %v382, %v425
    %v442 = vadd.f32 %v383, %v397
    %v443 = vadd.f32 %v384, %v401
    %v444 = vadd.f32 %v385, %v405
    %v445 = vadd.f32 %v386, %v409
    %v446 = vadd.f32 %v387, %v413
    %v447 = vadd.f32 %v388, %v417
    %v448 = vadd.f32 %v389, %v421
    %v449 = vadd.f32 %v390, %v425
    %v450 = vmax.f32 %v434, 0.0
    %v451 = vmax.f32 %v435, 0.0
    %v452 = vmax.f32 %v436, 0.0
    %v453 = vmax.f32 %v437, 0.0
    %v454 = vmax.f32 %v438, 0.0
    %v455 = vmax.f32 %v439, 0.0
    %v456 = vmax.f32 %v440, 0.0
    %v457 = vmax.f32 %v441, 0.0
    %v458 = vmax.f32 %v442, 0.0
    %v459 = vmax.f32 %v443, 0.0
    %v460 = vmax.f32 %v444, 0.0
    %v461 = vmax.f32 %v445, 0.0
    %v462 = vmax.f32 %v446, 0.0
    %v463 = vmax.f32 %v447, 0.0
    %v464 = vmax.f32 %v448, 0.0
    %v465 = vmax.f32 %v449, 0.0
    %s466 = smul.u32 4, 128
    %s467 = smul.u32 %s466, 4
    %s468 = sshll.u32 %s467, 4
    %469 = dma.done %s52, %s468
    %v470 = vld [vmem:[#allocation3] sm:$0xff]
    %v471 = vld [vmem:[#allocation3 + $0x8] sm:$0xff]
    %v472 = vld [vmem:[#allocation3 + $0x10] sm:$0xff]
    %v473 = vld [vmem:[#allocation3 + $0x18] sm:$0xff]
    %v474 = vld [vmem:[#allocation3 + $0x20] sm:$0xff]
    %v475 = vld [vmem:[#allocation3 + $0x28] sm:$0xff]
    %v476 = vld [vmem:[#allocation3 + $0x30] sm:$0xff]
    %v477 = vld [vmem:[#allocation3 + $0x38] sm:$0xff]
    %v478 = vld [vmem:[#allocation3 + $0x40] sm:$0xff]
    %v479 = vld [vmem:[#allocation3 + $0x48] sm:$0xff]
    %v480 = vld [vmem:[#allocation3 + $0x50] sm:$0xff]
    %v481 = vld [vmem:[#allocation3 + $0x58] sm:$0xff]
    %v482 = vld [vmem:[#allocation3 + $0x60] sm:$0xff]
    %v483 = vld [vmem:[#allocation3 + $0x68] sm:$0xff]
    %v484 = vld [vmem:[#allocation3 + $0x70] sm:$0xff]
    %v485 = vld [vmem:[#allocation3 + $0x78] sm:$0xff]
    %v486 = vld [vmem:[#allocation3 + $0x80] sm:$0xff]
    %v487 = vld [vmem:[#allocation3 + $0x88] sm:$0xff]
    %v488 = vld [vmem:[#allocation3 + $0x90] sm:$0xff]
    %v489 = vld [vmem:[#allocation3 + $0x98] sm:$0xff]
    %v490 = vld [vmem:[#allocation3 + $0xa0] sm:$0xff]
    %v491 = vld [vmem:[#allocation3 + $0xa8] sm:$0xff]
    %v492 = vld [vmem:[#allocation3 + $0xb0] sm:$0xff]
    %v493 = vld [vmem:[#allocation3 + $0xb8] sm:$0xff]
    %v494 = vld [vmem:[#allocation3 + $0xc0] sm:$0xff]
    %v495 = vld [vmem:[#allocation3 + $0xc8] sm:$0xff]
    %v496 = vld [vmem:[#allocation3 + $0xd0] sm:$0xff]
    %v497 = vld [vmem:[#allocation3 + $0xd8] sm:$0xff]
    %v498 = vld [vmem:[#allocation3 + $0xe0] sm:$0xff]
    %v499 = vld [vmem:[#allocation3 + $0xe8] sm:$0xff]
    %v500 = vld [vmem:[#allocation3 + $0xf0] sm:$0xff]
    %v501 = vld [vmem:[#allocation3 + $0xf8] sm:$0xff]
    %v502 = vld [vmem:[#allocation3 + $0x100] sm:$0xff]
    %v503 = vld [vmem:[#allocation3 + $0x108] sm:$0xff]
    %v504 = vld [vmem:[#allocation3 + $0x110] sm:$0xff]
    %v505 = vld [vmem:[#allocation3 + $0x118] sm:$0xff]
    %v506 = vld [vmem:[#allocation3 + $0x120] sm:$0xff]
    %v507 = vld [vmem:[#allocation3 + $0x128] sm:$0xff]
    %v508 = vld [vmem:[#allocation3 + $0x130] sm:$0xff]
    %v509 = vld [vmem:[#allocation3 + $0x138] sm:$0xff]
    %v510 = vld [vmem:[#allocation3 + $0x140] sm:$0xff]
    %v511 = vld [vmem:[#allocation3 + $0x148] sm:$0xff]
    %v512 = vld [vmem:[#allocation3 + $0x150] sm:$0xff]
    %v513 = vld [vmem:[#allocation3 + $0x158] sm:$0xff]
    %v514 = vld [vmem:[#allocation3 + $0x160] sm:$0xff]
    %v515 = vld [vmem:[#allocation3 + $0x168] sm:$0xff]
    %v516 = vld [vmem:[#allocation3 + $0x170] sm:$0xff]
    %v517 = vld [vmem:[#allocation3 + $0x178] sm:$0xff]
    %v518 = vld [vmem:[#allocation3 + $0x180] sm:$0xff]
    %v519 = vld [vmem:[#allocation3 + $0x188] sm:$0xff]
    %v520 = vld [vmem:[#allocation3 + $0x190] sm:$0xff]
    %v521 = vld [vmem:[#allocation3 + $0x198] sm:$0xff]
    %v522 = vld [vmem:[#allocation3 + $0x1a0] sm:$0xff]
    %v523 = vld [vmem:[#allocation3 + $0x1a8] sm:$0xff]
    %v524 = vld [vmem:[#allocation3 + $0x1b0] sm:$0xff]
    %v525 = vld [vmem:[#allocation3 + $0x1b8] sm:$0xff]
    %v526 = vld [vmem:[#allocation3 + $0x1c0] sm:$0xff]
    %v527 = vld [vmem:[#allocation3 + $0x1c8] sm:$0xff]
    %v528 = vld [vmem:[#allocation3 + $0x1d0] sm:$0xff]
    %v529 = vld [vmem:[#allocation3 + $0x1d8] sm:$0xff]
    %v530 = vld [vmem:[#allocation3 + $0x1e0] sm:$0xff]
    %v531 = vld [vmem:[#allocation3 + $0x1e8] sm:$0xff]
    %v532 = vld [vmem:[#allocation3 + $0x1f0] sm:$0xff]
    %v533 = vld [vmem:[#allocation3 + $0x1f8] sm:$0xff]
    %v534 = vld [vmem:[#allocation3 + $0x200] sm:$0xff]
    %v535 = vld [vmem:[#allocation3 + $0x208] sm:$0xff]
    %v536 = vld [vmem:[#allocation3 + $0x210] sm:$0xff]
    %v537 = vld [vmem:[#allocation3 + $0x218] sm:$0xff]
    %v538 = vld [vmem:[#allocation3 + $0x220] sm:$0xff]
    %v539 = vld [vmem:[#allocation3 + $0x228] sm:$0xff]
    %v540 = vld [vmem:[#allocation3 + $0x230] sm:$0xff]
    %v541 = vld [vmem:[#allocation3 + $0x238] sm:$0xff]
    %v542 = vld [vmem:[#allocation3 + $0x240] sm:$0xff]
    %v543 = vld [vmem:[#allocation3 + $0x248] sm:$0xff]
    %v544 = vld [vmem:[#allocation3 + $0x250] sm:$0xff]
    %v545 = vld [vmem:[#allocation3 + $0x258] sm:$0xff]
    %v546 = vld [vmem:[#allocation3 + $0x260] sm:$0xff]
    %v547 = vld [vmem:[#allocation3 + $0x268] sm:$0xff]
    %v548 = vld [vmem:[#allocation3 + $0x270] sm:$0xff]
    %v549 = vld [vmem:[#allocation3 + $0x278] sm:$0xff]
    %v550 = vld [vmem:[#allocation3 + $0x280] sm:$0xff]
    %v551 = vld [vmem:[#allocation3 + $0x288] sm:$0xff]
    %v552 = vld [vmem:[#allocation3 + $0x290] sm:$0xff]
    %v553 = vld [vmem:[#allocation3 + $0x298] sm:$0xff]
    %v554 = vld [vmem:[#allocation3 + $0x2a0] sm:$0xff]
    %v555 = vld [vmem:[#allocation3 + $0x2a8] sm:$0xff]
    %v556 = vld [vmem:[#allocation3 + $0x2b0] sm:$0xff]
    %v557 = vld [vmem:[#allocation3 + $0x2b8] sm:$0xff]
    %v558 = vld [vmem:[#allocation3 + $0x2c0] sm:$0xff]
    %v559 = vld [vmem:[#allocation3 + $0x2c8] sm:$0xff]
    %v560 = vld [vmem:[#allocation3 + $0x2d0] sm:$0xff]
    %v561 = vld [vmem:[#allocation3 + $0x2d8] sm:$0xff]
    %v562 = vld [vmem:[#allocation3 + $0x2e0] sm:$0xff]
    %v563 = vld [vmem:[#allocation3 + $0x2e8] sm:$0xff]
    %v564 = vld [vmem:[#allocation3 + $0x2f0] sm:$0xff]
    %v565 = vld [vmem:[#allocation3 + $0x2f8] sm:$0xff]
    %v566 = vld [vmem:[#allocation3 + $0x300] sm:$0xff]
    %v567 = vld [vmem:[#allocation3 + $0x308] sm:$0xff]
    %v568 = vld [vmem:[#allocation3 + $0x310] sm:$0xff]
    %v569 = vld [vmem:[#allocation3 + $0x318] sm:$0xff]
    %v570 = vld [vmem:[#allocation3 + $0x320] sm:$0xff]
    %v571 = vld [vmem:[#allocation3 + $0x328] sm:$0xff]
    %v572 = vld [vmem:[#allocation3 + $0x330] sm:$0xff]
    %v573 = vld [vmem:[#allocation3 + $0x338] sm:$0xff]
    %v574 = vld [vmem:[#allocation3 + $0x340] sm:$0xff]
    %v575 = vld [vmem:[#allocation3 + $0x348] sm:$0xff]
    %v576 = vld [vmem:[#allocation3 + $0x350] sm:$0xff]
    %v577 = vld [vmem:[#allocation3 + $0x358] sm:$0xff]
    %v578 = vld [vmem:[#allocation3 + $0x360] sm:$0xff]
    %v579 = vld [vmem:[#allocation3 + $0x368] sm:$0xff]
    %v580 = vld [vmem:[#allocation3 + $0x370] sm:$0xff]
    %v581 = vld [vmem:[#allocation3 + $0x378] sm:$0xff]
    %v582 = vld [vmem:[#allocation3 + $0x380] sm:$0xff]
    %v583 = vld [vmem:[#allocation3 + $0x388] sm:$0xff]
    %v584 = vld [vmem:[#allocation3 + $0x390] sm:$0xff]
    %v585 = vld [vmem:[#allocation3 + $0x398] sm:$0xff]
    %v586 = vld [vmem:[#allocation3 + $0x3a0] sm:$0xff]
    %v587 = vld [vmem:[#allocation3 + $0x3a8] sm:$0xff]
    %v588 = vld [vmem:[#allocation3 + $0x3b0] sm:$0xff]
    %v589 = vld [vmem:[#allocation3 + $0x3b8] sm:$0xff]
    %v590 = vld [vmem:[#allocation3 + $0x3c0] sm:$0xff]
    %v591 = vld [vmem:[#allocation3 + $0x3c8] sm:$0xff]
    %v592 = vld [vmem:[#allocation3 + $0x3d0] sm:$0xff]
    %v593 = vld [vmem:[#allocation3 + $0x3d8] sm:$0xff]
    %v594 = vld [vmem:[#allocation3 + $0x3e0] sm:$0xff]
    %v595 = vld [vmem:[#allocation3 + $0x3e8] sm:$0xff]
    %v596 = vld [vmem:[#allocation3 + $0x3f0] sm:$0xff]
    %v597 = vld [vmem:[#allocation3 + $0x3f8] sm:$0xff]
    %v598 = vld [vmem:[#allocation3 + $0x400] sm:$0xff]
    %v599 = vld [vmem:[#allocation3 + $0x408] sm:$0xff]
    %v600 = vld [vmem:[#allocation3 + $0x410] sm:$0xff]
    %v601 = vld [vmem:[#allocation3 + $0x418] sm:$0xff]
    %v602 = vld [vmem:[#allocation3 + $0x420] sm:$0xff]
    %v603 = vld [vmem:[#allocation3 + $0x428] sm:$0xff]
    %v604 = vld [vmem:[#allocation3 + $0x430] sm:$0xff]
    %v605 = vld [vmem:[#allocation3 + $0x438] sm:$0xff]
    %v606 = vld [vmem:[#allocation3 + $0x440] sm:$0xff]
    %v607 = vld [vmem:[#allocation3 + $0x448] sm:$0xff]
    %v608 = vld [vmem:[#allocation3 + $0x450] sm:$0xff]
    %v609 = vld [vmem:[#allocation3 + $0x458] sm:$0xff]
    %v610 = vld [vmem:[#allocation3 + $0x460] sm:$0xff]
    %v611 = vld [vmem:[#allocation3 + $0x468] sm:$0xff]
    %v612 = vld [vmem:[#allocation3 + $0x470] sm:$0xff]
    %v613 = vld [vmem:[#allocation3 + $0x478] sm:$0xff]
    %v614 = vld [vmem:[#allocation3 + $0x480] sm:$0xff]
    %v615 = vld [vmem:[#allocation3 + $0x488] sm:$0xff]
    %v616 = vld [vmem:[#allocation3 + $0x490] sm:$0xff]
    %v617 = vld [vmem:[#allocation3 + $0x498] sm:$0xff]
    %v618 = vld [vmem:[#allocation3 + $0x4a0] sm:$0xff]
    %v619 = vld [vmem:[#allocation3 + $0x4a8] sm:$0xff]
    %v620 = vld [vmem:[#allocation3 + $0x4b0] sm:$0xff]
    %v621 = vld [vmem:[#allocation3 + $0x4b8] sm:$0xff]
    %v622 = vld [vmem:[#allocation3 + $0x4c0] sm:$0xff]
    %v623 = vld [vmem:[#allocation3 + $0x4c8] sm:$0xff]
    %v624 = vld [vmem:[#allocation3 + $0x4d0] sm:$0xff]
    %v625 = vld [vmem:[#allocation3 + $0x4d8] sm:$0xff]
    %v626 = vld [vmem:[#allocation3 + $0x4e0] sm:$0xff]
    %v627 = vld [vmem:[#allocation3 + $0x4e8] sm:$0xff]
    %v628 = vld [vmem:[#allocation3 + $0x4f0] sm:$0xff]
    %v629 = vld [vmem:[#allocation3 + $0x4f8] sm:$0xff]
    %v630 = vld [vmem:[#allocation3 + $0x500] sm:$0xff]
    %v631 = vld [vmem:[#allocation3 + $0x508] sm:$0xff]
    %v632 = vld [vmem:[#allocation3 + $0x510] sm:$0xff]
    %v633 = vld [vmem:[#allocation3 + $0x518] sm:$0xff]
    %v634 = vld [vmem:[#allocation3 + $0x520] sm:$0xff]
    %v635 = vld [vmem:[#allocation3 + $0x528] sm:$0xff]
    %v636 = vld [vmem:[#allocation3 + $0x530] sm:$0xff]
    %v637 = vld [vmem:[#allocation3 + $0x538] sm:$0xff]
    %v638 = vld [vmem:[#allocation3 + $0x540] sm:$0xff]
    %v639 = vld [vmem:[#allocation3 + $0x548] sm:$0xff]
    %v640 = vld [vmem:[#allocation3 + $0x550] sm:$0xff]
    %v641 = vld [vmem:[#allocation3 + $0x558] sm:$0xff]
    %v642 = vld [vmem:[#allocation3 + $0x560] sm:$0xff]
    %v643 = vld [vmem:[#allocation3 + $0x568] sm:$0xff]
    %v644 = vld [vmem:[#allocation3 + $0x570] sm:$0xff]
    %v645 = vld [vmem:[#allocation3 + $0x578] sm:$0xff]
    %v646 = vld [vmem:[#allocation3 + $0x580] sm:$0xff]
    %v647 = vld [vmem:[#allocation3 + $0x588] sm:$0xff]
    %v648 = vld [vmem:[#allocation3 + $0x590] sm:$0xff]
    %v649 = vld [vmem:[#allocation3 + $0x598] sm:$0xff]
    %v650 = vld [vmem:[#allocation3 + $0x5a0] sm:$0xff]
    %v651 = vld [vmem:[#allocation3 + $0x5a8] sm:$0xff]
    %v652 = vld [vmem:[#allocation3 + $0x5b0] sm:$0xff]
    %v653 = vld [vmem:[#allocation3 + $0x5b8] sm:$0xff]
    %v654 = vld [vmem:[#allocation3 + $0x5c0] sm:$0xff]
    %v655 = vld [vmem:[#allocation3 + $0x5c8] sm:$0xff]
    %v656 = vld [vmem:[#allocation3 + $0x5d0] sm:$0xff]
    %v657 = vld [vmem:[#allocation3 + $0x5d8] sm:$0xff]
    %v658 = vld [vmem:[#allocation3 + $0x5e0] sm:$0xff]
    %v659 = vld [vmem:[#allocation3 + $0x5e8] sm:$0xff]
    %v660 = vld [vmem:[#allocation3 + $0x5f0] sm:$0xff]
    %v661 = vld [vmem:[#allocation3 + $0x5f8] sm:$0xff]
    %v662 = vld [vmem:[#allocation3 + $0x600] sm:$0xff]
    %v663 = vld [vmem:[#allocation3 + $0x608] sm:$0xff]
    %v664 = vld [vmem:[#allocation3 + $0x610] sm:$0xff]
    %v665 = vld [vmem:[#allocation3 + $0x618] sm:$0xff]
    %v666 = vld [vmem:[#allocation3 + $0x620] sm:$0xff]
    %v667 = vld [vmem:[#allocation3 + $0x628] sm:$0xff]
    %v668 = vld [vmem:[#allocation3 + $0x630] sm:$0xff]
    %v669 = vld [vmem:[#allocation3 + $0x638] sm:$0xff]
    %v670 = vld [vmem:[#allocation3 + $0x640] sm:$0xff]
    %v671 = vld [vmem:[#allocation3 + $0x648] sm:$0xff]
    %v672 = vld [vmem:[#allocation3 + $0x650] sm:$0xff]
    %v673 = vld [vmem:[#allocation3 + $0x658] sm:$0xff]
    %v674 = vld [vmem:[#allocation3 + $0x660] sm:$0xff]
    %v675 = vld [vmem:[#allocation3 + $0x668] sm:$0xff]
    %v676 = vld [vmem:[#allocation3 + $0x670] sm:$0xff]
    %v677 = vld [vmem:[#allocation3 + $0x678] sm:$0xff]
    %v678 = vld [vmem:[#allocation3 + $0x680] sm:$0xff]
    %v679 = vld [vmem:[#allocation3 + $0x688] sm:$0xff]
    %v680 = vld [vmem:[#allocation3 + $0x690] sm:$0xff]
    %v681 = vld [vmem:[#allocation3 + $0x698] sm:$0xff]
    %v682 = vld [vmem:[#allocation3 + $0x6a0] sm:$0xff]
    %v683 = vld [vmem:[#allocation3 + $0x6a8] sm:$0xff]
    %v684 = vld [vmem:[#allocation3 + $0x6b0] sm:$0xff]
    %v685 = vld [vmem:[#allocation3 + $0x6b8] sm:$0xff]
    %v686 = vld [vmem:[#allocation3 + $0x6c0] sm:$0xff]
    %v687 = vld [vmem:[#allocation3 + $0x6c8] sm:$0xff]
    %v688 = vld [vmem:[#allocation3 + $0x6d0] sm:$0xff]
    %v689 = vld [vmem:[#allocation3 + $0x6d8] sm:$0xff]
    %v690 = vld [vmem:[#allocation3 + $0x6e0] sm:$0xff]
    %v691 = vld [vmem:[#allocation3 + $0x6e8] sm:$0xff]
    %v692 = vld [vmem:[#allocation3 + $0x6f0] sm:$0xff]
    %v693 = vld [vmem:[#allocation3 + $0x6f8] sm:$0xff]
    %v694 = vld [vmem:[#allocation3 + $0x700] sm:$0xff]
    %v695 = vld [vmem:[#allocation3 + $0x708] sm:$0xff]
    %v696 = vld [vmem:[#allocation3 + $0x710] sm:$0xff]
    %v697 = vld [vmem:[#allocation3 + $0x718] sm:$0xff]
    %v698 = vld [vmem:[#allocation3 + $0x720] sm:$0xff]
    %v699 = vld [vmem:[#allocation3 + $0x728] sm:$0xff]
    %v700 = vld [vmem:[#allocation3 + $0x730] sm:$0xff]
    %v701 = vld [vmem:[#allocation3 + $0x738] sm:$0xff]
    %v702 = vld [vmem:[#allocation3 + $0x740] sm:$0xff]
    %v703 = vld [vmem:[#allocation3 + $0x748] sm:$0xff]
    %v704 = vld [vmem:[#allocation3 + $0x750] sm:$0xff]
    %v705 = vld [vmem:[#allocation3 + $0x758] sm:$0xff]
    %v706 = vld [vmem:[#allocation3 + $0x760] sm:$0xff]
    %v707 = vld [vmem:[#allocation3 + $0x768] sm:$0xff]
    %v708 = vld [vmem:[#allocation3 + $0x770] sm:$0xff]
    %v709 = vld [vmem:[#allocation3 + $0x778] sm:$0xff]
    %v710 = vld [vmem:[#allocation3 + $0x780] sm:$0xff]
    %v711 = vld [vmem:[#allocation3 + $0x788] sm:$0xff]
    %v712 = vld [vmem:[#allocation3 + $0x790] sm:$0xff]
    %v713 = vld [vmem:[#allocation3 + $0x798] sm:$0xff]
    %v714 = vld [vmem:[#allocation3 + $0x7a0] sm:$0xff]
    %v715 = vld [vmem:[#allocation3 + $0x7a8] sm:$0xff]
    %v716 = vld [vmem:[#allocation3 + $0x7b0] sm:$0xff]
    %v717 = vld [vmem:[#allocation3 + $0x7b8] sm:$0xff]
    %v718 = vld [vmem:[#allocation3 + $0x7c0] sm:$0xff]
    %v719 = vld [vmem:[#allocation3 + $0x7c8] sm:$0xff]
    %v720 = vld [vmem:[#allocation3 + $0x7d0] sm:$0xff]
    %v721 = vld [vmem:[#allocation3 + $0x7d8] sm:$0xff]
    %v722 = vld [vmem:[#allocation3 + $0x7e0] sm:$0xff]
    %v723 = vld [vmem:[#allocation3 + $0x7e8] sm:$0xff]
    %v724 = vld [vmem:[#allocation3 + $0x7f0] sm:$0xff]
    %v725 = vld [vmem:[#allocation3 + $0x7f8] sm:$0xff]
    %v726 = vpack.c.bf16 %v458, %v450
    %v727 = vpack.c.bf16 %v459, %v451
    %v728 = vpack.c.bf16 %v460, %v452
    %v729 = vpack.c.bf16 %v461, %v453
    %v730 = vpack.c.bf16 %v462, %v454
    %v731 = vpack.c.bf16 %v463, %v455
    %v732 = vpack.c.bf16 %v464, %v456
    %v733 = vpack.c.bf16 %v465, %v457
    %734 = vmatprep.subr.bf16.mxu0 %v471
    %735 = vmatpush1.bf16.msra.mxu0 %v470
    %736 = vmatprep.subr.bf16.mxu0 %v475
    %737 = vmatpush1.bf16.msra.mxu0 %v474
    %738 = vmatprep.subr.bf16.mxu0 %v479
    %739 = vmatpush1.bf16.msra.mxu0 %v478
    %740 = vmatprep.subr.bf16.mxu0 %v483
    %741 = vmatpush1.bf16.msra.mxu0 %v482
    %742 = vmatprep.subr.bf16.mxu0 %v487
    %743 = vmatpush1.bf16.msra.mxu0 %v486
    %744 = vmatprep.subr.bf16.mxu0 %v491
    %745 = vmatpush1.bf16.msra.mxu0 %v490
    %746 = vmatprep.subr.bf16.mxu0 %v495
    %747 = vmatpush1.bf16.msra.mxu0 %v494
    %748 = vmatprep.subr.bf16.mxu0 %v499
    %749 = vmatpush1.bf16.msra.mxu0 %v498
    %750 = vmatprep.subr.bf16.mxu0 %v503
    %751 = vmatpush1.bf16.msra.mxu0 %v502
    %752 = vmatprep.subr.bf16.mxu0 %v507
    %753 = vmatpush1.bf16.msra.mxu0 %v506
    %754 = vmatprep.subr.bf16.mxu0 %v511
    %755 = vmatpush1.bf16.msra.mxu0 %v510
    %756 = vmatprep.subr.bf16.mxu0 %v515
    %757 = vmatpush1.bf16.msra.mxu0 %v514
    %758 = vmatprep.subr.bf16.mxu0 %v519
    %759 = vmatpush1.bf16.msra.mxu0 %v518
    %760 = vmatprep.subr.bf16.mxu0 %v523
    %761 = vmatpush1.bf16.msra.mxu0 %v522
    %762 = vmatprep.subr.bf16.mxu0 %v527
    %763 = vmatpush1.bf16.msra.mxu0 %v526
    %764 = vmatprep.subr.bf16.mxu0 %v531
    %765 = vmatpush1.bf16.msra.mxu0 %v530
    %766 = vmatprep.mubr.bf16.mxu0 %v727
    %767 = vmatmul.mubr.bf16.gmra.mrb[0].mxu0 %v726
    %v768 = vpop.f32.mrb[0].mxu0
    %v769 = vadd.f32 0.0, %v768
    %v770 = vpop.f32.mrb[0].mxu0
    %v771 = vadd.f32 0.0, %v770
    %v772 = vpop.f32.mrb[0].mxu0
    %v773 = vadd.f32 0.0, %v772
    %v774 = vpop.f32.mrb[0].mxu0
    %v775 = vadd.f32 0.0, %v774
    %776 = vdwg.mxu0
    %777 = vmatprep.subr.bf16.mxu0 %v535
    %778 = vmatpush1.bf16.msra.mxu0 %v534
    %779 = vmatprep.subr.bf16.mxu0 %v539
    %780 = vmatpush1.bf16.msra.mxu0 %v538
    %781 = vmatprep.subr.bf16.mxu0 %v543
    %782 = vmatpush1.bf16.msra.mxu0 %v542
    %783 = vmatprep.subr.bf16.mxu0 %v547
    %784 = vmatpush1.bf16.msra.mxu0 %v546
    %785 = vmatprep.subr.bf16.mxu0 %v551
    %786 = vmatpush1.bf16.msra.mxu0 %v550
    %787 = vmatprep.subr.bf16.mxu0 %v555
    %788 = vmatpush1.bf16.msra.mxu0 %v554
    %789 = vmatprep.subr.bf16.mxu0 %v559
    %790 = vmatpush1.bf16.msra.mxu0 %v558
    %791 = vmatprep.subr.bf16.mxu0 %v563
    %792 = vmatpush1.bf16.msra.mxu0 %v562
    %793 = vmatprep.subr.bf16.mxu0 %v567
    %794 = vmatpush1.bf16.msra.mxu0 %v566
    %795 = vmatprep.subr.bf16.mxu0 %v571
    %796 = vmatpush1.bf16.msra.mxu0 %v570
    %797 = vmatprep.subr.bf16.mxu0 %v575
    %798 = vmatpush1.bf16.msra.mxu0 %v574
    %799 = vmatprep.subr.bf16.mxu0 %v579
    %800 = vmatpush1.bf16.msra.mxu0 %v578
    %801 = vmatprep.subr.bf16.mxu0 %v583
    %802 = vmatpush1.bf16.msra.mxu0 %v582
    %803 = vmatprep.subr.bf16.mxu0 %v587
    %804 = vmatpush1.bf16.msra.mxu0 %v586
    %805 = vmatprep.subr.bf16.mxu0 %v591
    %806 = vmatpush1.bf16.msra.mxu0 %v590
    %807 = vmatprep.subr.bf16.mxu0 %v595
    %808 = vmatpush1.bf16.msra.mxu0 %v594
    %809 = vmatprep.mubr.bf16.mxu0 %v729
    %810 = vmatmul.mubr.bf16.gmra.mrb[0].mxu0 %v728
    %v811 = vpop.f32.mrb[0].mxu0
    %v812 = vadd.f32 %v769, %v811
    %v813 = vpop.f32.mrb[0].mxu0
    %v814 = vadd.f32 %v771, %v813
    %v815 = vpop.f32.mrb[0].mxu0
    %v816 = vadd.f32 %v773, %v815
    %v817 = vpop.f32.mrb[0].mxu0
    %v818 = vadd.f32 %v775, %v817
    %819 = vdwg.mxu0
    %820 = vmatprep.subr.bf16.mxu0 %v599
    %821 = vmatpush1.bf16.msra.mxu0 %v598
    %822 = vmatprep.subr.bf16.mxu0 %v603
    %823 = vmatpush1.bf16.msra.mxu0 %v602
    %824 = vmatprep.subr.bf16.mxu0 %v607
    %825 = vmatpush1.bf16.msra.mxu0 %v606
    %826 = vmatprep.subr.bf16.mxu0 %v611
    %827 = vmatpush1.bf16.msra.mxu0 %v610
    %828 = vmatprep.subr.bf16.mxu0 %v615
    %829 = vmatpush1.bf16.msra.mxu0 %v614
    %830 = vmatprep.subr.bf16.mxu0 %v619
    %831 = vmatpush1.bf16.msra.mxu0 %v618
    %832 = vmatprep.subr.bf16.mxu0 %v623
    %833 = vmatpush1.bf16.msra.mxu0 %v622
    %834 = vmatprep.subr.bf16.mxu0 %v627
    %835 = vmatpush1.bf16.msra.mxu0 %v626
    %836 = vmatprep.subr.bf16.mxu0 %v631
    %837 = vmatpush1.bf16.msra.mxu0 %v630
    %838 = vmatprep.subr.bf16.mxu0 %v635
    %839 = vmatpush1.bf16.msra.mxu0 %v634
    %840 = vmatprep.subr.bf16.mxu0 %v639
    %841 = vmatpush1.bf16.msra.mxu0 %v638
    %842 = vmatprep.subr.bf16.mxu0 %v643
    %843 = vmatpush1.bf16.msra.mxu0 %v642
    %844 = vmatprep.subr.bf16.mxu0 %v647
    %845 = vmatpush1.bf16.msra.mxu0 %v646
    %846 = vmatprep.subr.bf16.mxu0 %v651
    %847 = vmatpush1.bf16.msra.mxu0 %v650
    %848 = vmatprep.subr.bf16.mxu0 %v655
    %849 = vmatpush1.bf16.msra.mxu0 %v654
    %850 = vmatprep.subr.bf16.mxu0 %v659
    %851 = vmatpush1.bf16.msra.mxu0 %v658
    %852 = vmatprep.mubr.bf16.mxu0 %v731
    %853 = vmatmul.mubr.bf16.gmra.mrb[0].mxu0 %v730
    %v854 = vpop.f32.mrb[0].mxu0
    %v855 = vadd.f32 %v812, %v854
    %v856 = vpop.f32.mrb[0].mxu0
    %v857 = vadd.f32 %v814, %v856
    %v858 = vpop.f32.mrb[0].mxu0
    %v859 = vadd.f32 %v816, %v858
    %v860 = vpop.f32.mrb[0].mxu0
    %v861 = vadd.f32 %v818, %v860
    %862 = vdwg.mxu0
    %863 = vmatprep.subr.bf16.mxu0 %v663
    %864 = vmatpush1.bf16.msra.mxu0 %v662
    %865 = vmatprep.subr.bf16.mxu0 %v667
    %866 = vmatpush1.bf16.msra.mxu0 %v666
    %867 = vmatprep.subr.bf16.mxu0 %v671
    %868 = vmatpush1.bf16.msra.mxu0 %v670
    %869 = vmatprep.subr.bf16.mxu0 %v675
    %870 = vmatpush1.bf16.msra.mxu0 %v674
    %871 = vmatprep.subr.bf16.mxu0 %v679
    %872 = vmatpush1.bf16.msra.mxu0 %v678
    %873 = vmatprep.subr.bf16.mxu0 %v683
    %874 = vmatpush1.bf16.msra.mxu0 %v682
    %875 = vmatprep.subr.bf16.mxu0 %v687
    %876 = vmatpush1.bf16.msra.mxu0 %v686
    %877 = vmatprep.subr.bf16.mxu0 %v691
    %878 = vmatpush1.bf16.msra.mxu0 %v690
    %879 = vmatprep.subr.bf16.mxu0 %v695
    %880 = vmatpush1.bf16.msra.mxu0 %v694
    %881 = vmatprep.subr.bf16.mxu0 %v699
    %882 = vmatpush1.bf16.msra.mxu0 %v698
    %883 = vmatprep.subr.bf16.mxu0 %v703
    %884 = vmatpush1.bf16.msra.mxu0 %v702
    %885 = vmatprep.subr.bf16.mxu0 %v707
    %886 = vmatpush1.bf16.msra.mxu0 %v706
    %887 = vmatprep.subr.bf16.mxu0 %v711
    %888 = vmatpush1.bf16.msra.mxu0 %v710
    %889 = vmatprep.subr.bf16.mxu0 %v715
    %890 = vmatpush1.bf16.msra.mxu0 %v714
    %891 = vmatprep.subr.bf16.mxu0 %v719
    %892 = vmatpush1.bf16.msra.mxu0 %v718
    %893 = vmatprep.subr.bf16.mxu0 %v723
    %894 = vmatpush1.bf16.msra.mxu0 %v722
    %895 = vmatprep.mubr.bf16.mxu0 %v733
    %896 = vmatmul.mubr.bf16.gmra.mrb[0].mxu0 %v732
    %v897 = vpop.f32.mrb[0].mxu0
    %v898 = vadd.f32 %v855, %v897
    %v899 = vpop.f32.mrb[0].mxu0
    %v900 = vadd.f32 %v857, %v899
    %v901 = vpop.f32.mrb[0].mxu0
    %v902 = vadd.f32 %v859, %v901
    %v903 = vpop.f32.mrb[0].mxu0
    %v904 = vadd.f32 %v861, %v903
    %905 = vdwg.mxu0
    %906 = vmatprep.subr.bf16.mxu0 %v473
    %907 = vmatpush1.bf16.msra.mxu0 %v472
    %908 = vmatprep.subr.bf16.mxu0 %v477
    %909 = vmatpush1.bf16.msra.mxu0 %v476
    %910 = vmatprep.subr.bf16.mxu0 %v481
    %911 = vmatpush1.bf16.msra.mxu0 %v480
    %912 = vmatprep.subr.bf16.mxu0 %v485
    %913 = vmatpush1.bf16.msra.mxu0 %v484
    %914 = vmatprep.subr.bf16.mxu0 %v489
    %915 = vmatpush1.bf16.msra.mxu0 %v488
    %916 = vmatprep.subr.bf16.mxu0 %v493
    %917 = vmatpush1.bf16.msra.mxu0 %v492
    %918 = vmatprep.subr.bf16.mxu0 %v497
    %919 = vmatpush1.bf16.msra.mxu0 %v496
    %920 = vmatprep.subr.bf16.mxu0 %v501
    %921 = vmatpush1.bf16.msra.mxu0 %v500
    %922 = vmatprep.subr.bf16.mxu0 %v505
    %923 = vmatpush1.bf16.msra.mxu0 %v504
    %924 = vmatprep.subr.bf16.mxu0 %v509
    %925 = vmatpush1.bf16.msra.mxu0 %v508
    %926 = vmatprep.subr.bf16.mxu0 %v513
    %927 = vmatpush1.bf16.msra.mxu0 %v512
    %928 = vmatprep.subr.bf16.mxu0 %v517
    %929 = vmatpush1.bf16.msra.mxu0 %v516
    %930 = vmatprep.subr.bf16.mxu0 %v521
    %931 = vmatpush1.bf16.msra.mxu0 %v520
    %932 = vmatprep.subr.bf16.mxu0 %v525
    %933 = vmatpush1.bf16.msra.mxu0 %v524
    %934 = vmatprep.subr.bf16.mxu0 %v529
    %935 = vmatpush1.bf16.msra.mxu0 %v528
    %936 = vmatprep.subr.bf16.mxu0 %v533
    %937 = vmatpush1.bf16.msra.mxu0 %v532
    %938 = vmatprep.mubr.bf16.mxu0 %v727
    %939 = vmatmul.mubr.bf16.gmra.mrb[0].mxu0 %v726
    %v940 = vpop.f32.mrb[0].mxu0
    %v941 = vadd.f32 0.0, %v940
    %v942 = vpop.f32.mrb[0].mxu0
    %v943 = vadd.f32 0.0, %v942
    %v944 = vpop.f32.mrb[0].mxu0
    %v945 = vadd.f32 0.0, %v944
    %v946 = vpop.f32.mrb[0].mxu0
    %v947 = vadd.f32 0.0, %v946
    %948 = vdwg.mxu0
    %949 = vmatprep.subr.bf16.mxu0 %v537
    %950 = vmatpush1.bf16.msra.mxu0 %v536
    %951 = vmatprep.subr.bf16.mxu0 %v541
    %952 = vmatpush1.bf16.msra.mxu0 %v540
    %953 = vmatprep.subr.bf16.mxu0 %v545
    %954 = vmatpush1.bf16.msra.mxu0 %v544
    %955 = vmatprep.subr.bf16.mxu0 %v549
    %956 = vmatpush1.bf16.msra.mxu0 %v548
    %957 = vmatprep.subr.bf16.mxu0 %v553
    %958 = vmatpush1.bf16.msra.mxu0 %v552
    %959 = vmatprep.subr.bf16.mxu0 %v557
    %960 = vmatpush1.bf16.msra.mxu0 %v556
    %961 = vmatprep.subr.bf16.mxu0 %v561
    %962 = vmatpush1.bf16.msra.mxu0 %v560
    %963 = vmatprep.subr.bf16.mxu0 %v565
    %964 = vmatpush1.bf16.msra.mxu0 %v564
    %965 = vmatprep.subr.bf16.mxu0 %v569
    %966 = vmatpush1.bf16.msra.mxu0 %v568
    %967 = vmatprep.subr.bf16.mxu0 %v573
    %968 = vmatpush1.bf16.msra.mxu0 %v572
    %969 = vmatprep.subr.bf16.mxu0 %v577
    %970 = vmatpush1.bf16.msra.mxu0 %v576
    %971 = vmatprep.subr.bf16.mxu0 %v581
    %972 = vmatpush1.bf16.msra.mxu0 %v580
    %973 = vmatprep.subr.bf16.mxu0 %v585
    %974 = vmatpush1.bf16.msra.mxu0 %v584
    %975 = vmatprep.subr.bf16.mxu0 %v589
    %976 = vmatpush1.bf16.msra.mxu0 %v588
    %977 = vmatprep.subr.bf16.mxu0 %v593
    %978 = vmatpush1.bf16.msra.mxu0 %v592
    %979 = vmatprep.subr.bf16.mxu0 %v597
    %980 = vmatpush1.bf16.msra.mxu0 %v596
    %981 = vmatprep.mubr.bf16.mxu0 %v729
    %982 = vmatmul.mubr.bf16.gmra.mrb[0].mxu0 %v728
    %v983 = vpop.f32.mrb[0].mxu0
    %v984 = vadd.f32 %v941, %v983
    %v985 = vpop.f32.mrb[0].mxu0
    %v986 = vadd.f32 %v943, %v985
    %v987 = vpop.f32.mrb[0].mxu0
    %v988 = vadd.f32 %v945, %v987
    %v989 = vpop.f32.mrb[0].mxu0
    %v990 = vadd.f32 %v947, %v989
    %991 = vdwg.mxu0
    %992 = vmatprep.subr.bf16.mxu0 %v601
    %993 = vmatpush1.bf16.msra.mxu0 %v600
    %994 = vmatprep.subr.bf16.mxu0 %v605
    %995 = vmatpush1.bf16.msra.mxu0 %v604
    %996 = vmatprep.subr.bf16.mxu0 %v609
    %997 = vmatpush1.bf16.msra.mxu0 %v608
    %998 = vmatprep.subr.bf16.mxu0 %v613
    %999 = vmatpush1.bf16.msra.mxu0 %v612
    %1000 = vmatprep.subr.bf16.mxu0 %v617
    %1001 = vmatpush1.bf16.msra.mxu0 %v616
    %1002 = vmatprep.subr.bf16.mxu0 %v621
    %1003 = vmatpush1.bf16.msra.mxu0 %v620
    %1004 = vmatprep.subr.bf16.mxu0 %v625
    %1005 = vmatpush1.bf16.msra.mxu0 %v624
    %1006 = vmatprep.subr.bf16.mxu0 %v629
    %1007 = vmatpush1.bf16.msra.mxu0 %v628
    %1008 = vmatprep.subr.bf16.mxu0 %v633
    %1009 = vmatpush1.bf16.msra.mxu0 %v632
    %1010 = vmatprep.subr.bf16.mxu0 %v637
    %1011 = vmatpush1.bf16.msra.mxu0 %v636
    %1012 = vmatprep.subr.bf16.mxu0 %v641
    %1013 = vmatpush1.bf16.msra.mxu0 %v640
    %1014 = vmatprep.subr.bf16.mxu0 %v645
    %1015 = vmatpush1.bf16.msra.mxu0 %v644
    %1016 = vmatprep.subr.bf16.mxu0 %v649
    %1017 = vmatpush1.bf16.msra.mxu0 %v648
    %1018 = vmatprep.subr.bf16.mxu0 %v653
    %1019 = vmatpush1.bf16.msra.mxu0 %v652
    %1020 = vmatprep.subr.bf16.mxu0 %v657
    %1021 = vmatpush1.bf16.msra.mxu0 %v656
    %1022 = vmatprep.subr.bf16.mxu0 %v661
    %1023 = vmatpush1.bf16.msra.mxu0 %v660
    %1024 = vmatprep.mubr.bf16.mxu0 %v731
    %1025 = vmatmul.mubr.bf16.gmra.mrb[0].mxu0 %v730
    %v1026 = vpop.f32.mrb[0].mxu0
    %v1027 = vadd.f32 %v984, %v1026
    %v1028 = vpop.f32.mrb[0].mxu0
    %v1029 = vadd.f32 %v986, %v1028
    %v1030 = vpop.f32.mrb[0].mxu0
    %v1031 = vadd.f32 %v988, %v1030
    %v1032 = vpop.f32.mrb[0].mxu0
    %v1033 = vadd.f32 %v990, %v1032
    %1034 = vdwg.mxu0
    %1035 = vmatprep.subr.bf16.mxu0 %v665
    %1036 = vmatpush1.bf16.msra.mxu0 %v664
    %1037 = vmatprep.subr.bf16.mxu0 %v669
    %1038 = vmatpush1.bf16.msra.mxu0 %v668
    %1039 = vmatprep.subr.bf16.mxu0 %v673
    %1040 = vmatpush1.bf16.msra.mxu0 %v672
    %1041 = vmatprep.subr.bf16.mxu0 %v677
    %1042 = vmatpush1.bf16.msra.mxu0 %v676
    %1043 = vmatprep.subr.bf16.mxu0 %v681
    %1044 = vmatpush1.bf16.msra.mxu0 %v680
    %1045 = vmatprep.subr.bf16.mxu0 %v685
    %1046 = vmatpush1.bf16.msra.mxu0 %v684
    %1047 = vmatprep.subr.bf16.mxu0 %v689
    %1048 = vmatpush1.bf16.msra.mxu0 %v688
    %1049 = vmatprep.subr.bf16.mxu0 %v693
    %1050 = vmatpush1.bf16.msra.mxu0 %v692
    %1051 = vmatprep.subr.bf16.mxu0 %v697
    %1052 = vmatpush1.bf16.msra.mxu0 %v696
    %1053 = vmatprep.subr.bf16.mxu0 %v701
    %1054 = vmatpush1.bf16.msra.mxu0 %v700
    %1055 = vmatprep.subr.bf16.mxu0 %v705
    %1056 = vmatpush1.bf16.msra.mxu0 %v704
    %1057 = vmatprep.subr.bf16.mxu0 %v709
    %1058 = vmatpush1.bf16.msra.mxu0 %v708
    %1059 = vmatprep.subr.bf16.mxu0 %v713
    %1060 = vmatpush1.bf16.msra.mxu0 %v712
    %1061 = vmatprep.subr.bf16.mxu0 %v717
    %1062 = vmatpush1.bf16.msra.mxu0 %v716
    %1063 = vmatprep.subr.bf16.mxu0 %v721
    %1064 = vmatpush1.bf16.msra.mxu0 %v720
    %1065 = vmatprep.subr.bf16.mxu0 %v725
    %1066 = vmatpush1.bf16.msra.mxu0 %v724
    %1067 = vmatprep.mubr.bf16.mxu0 %v733
    %1068 = vmatmul.mubr.bf16.gmra.mrb[0].mxu0 %v732
    %v1069 = vpop.f32.mrb[0].mxu0
    %v1070 = vadd.f32 %v1027, %v1069
    %v1071 = vpop.f32.mrb[0].mxu0
    %v1072 = vadd.f32 %v1029, %v1071
    %v1073 = vpop.f32.mrb[0].mxu0
    %v1074 = vadd.f32 %v1031, %v1073
    %v1075 = vpop.f32.mrb[0].mxu0
    %v1076 = vadd.f32 %v1033, %v1075
    %1077 = vdwg.mxu0
    %s1078 = scalar_lea.vmem %s1, 16
    %v1079 = vld [vmem:[%s1078] ss:$2 sm:$0xf]
    %v1081 = vlaneseq
    %v1082 = vshrl.u32 %v1081, 7
    %v1083 = vsub.s32 0, %v1082
    %v1084 = vrot.slane %v1079, %v1083
    %v1085 = vlaneseq
    %v1086 = vshrl.u32 %v1085, 7
    %v1087 = vsub.s32 1, %v1086
    %v1088 = vrot.slane %v1079, %v1087
    %v1089 = vlaneseq
    %v1090 = vshrl.u32 %v1089, 7
    %v1091 = vsub.s32 2, %v1090
    %v1092 = vrot.slane %v1079, %v1091
    %v1093 = vlaneseq
    %v1094 = vshrl.u32 %v1093, 7
    %v1095 = vsub.s32 3, %v1094
    %v1096 = vrot.slane %v1079, %v1095
    %v1101 = vmul.f32 %v898, %v1084
    %v1102 = vmul.f32 %v900, %v1088
    %v1103 = vmul.f32 %v1070, %v1092
    %v1104 = vmul.f32 %v1072, %v1096
    %v1105 = vmul.f32 %v902, %v1084
    %v1106 = vmul.f32 %v904, %v1088
    %v1107 = vmul.f32 %v1074, %v1092
    %v1108 = vmul.f32 %v1076, %v1096
    %s1109 = scalar_lea.vmem %s1, 17
    %v1110 = vld [vmem:[%s1109] ss:$2 sm:$0xf]
    %v1112 = vlaneseq
    %v1113 = vshrl.u32 %v1112, 7
    %v1114 = vsub.s32 0, %v1113
    %v1115 = vrot.slane %v1110, %v1114
    %v1116 = vlaneseq
    %v1117 = vshrl.u32 %v1116, 7
    %v1118 = vsub.s32 1, %v1117
    %v1119 = vrot.slane %v1110, %v1118
    %v1120 = vlaneseq
    %v1121 = vshrl.u32 %v1120, 7
    %v1122 = vsub.s32 2, %v1121
    %v1123 = vrot.slane %v1110, %v1122
    %v1124 = vlaneseq
    %v1125 = vshrl.u32 %v1124, 7
    %v1126 = vsub.s32 3, %v1125
    %v1127 = vrot.slane %v1110, %v1126
    %v1132 = vadd.f32 %v1101, %v1115
    %v1133 = vadd.f32 %v1102, %v1119
    %v1134 = vadd.f32 %v1103, %v1123
    %v1135 = vadd.f32 %v1104, %v1127
    %v1136 = vadd.f32 %v1105, %v1115
    %v1137 = vadd.f32 %v1106, %v1119
    %v1138 = vadd.f32 %v1107, %v1123
    %v1139 = vadd.f32 %v1108, %v1127
    %v1140 = vmax.f32 %v1132, 0.0
    %v1141 = vmax.f32 %v1133, 0.0
    %v1142 = vmax.f32 %v1134, 0.0
    %v1143 = vmax.f32 %v1135, 0.0
    %v1144 = vmax.f32 %v1136, 0.0
    %v1145 = vmax.f32 %v1137, 0.0
    %v1146 = vmax.f32 %v1138, 0.0
    %v1147 = vmax.f32 %v1139, 0.0
    %s1148 = smul.u32 4, 64
    %s1149 = smul.u32 %s1148, 2
    %s1150 = sshll.u32 %s1149, 4
    %1151 = dma.done %s87, %s1150
    %v1152 = vld [vmem:[#allocation4] sm:$0xff]
    %v1153 = vld [vmem:[#allocation4 + $0x8] sm:$0xff]
    %v1154 = vld [vmem:[#allocation4 + $0x10] sm:$0xff]
    %v1155 = vld [vmem:[#allocation4 + $0x18] sm:$0xff]
    %v1156 = vld [vmem:[#allocation4 + $0x20] sm:$0xff]
    %v1157 = vld [vmem:[#allocation4 + $0x28] sm:$0xff]
    %v1158 = vld [vmem:[#allocation4 + $0x30] sm:$0xff]
    %v1159 = vld [vmem:[#allocation4 + $0x38] sm:$0xff]
    %v1160 = vld [vmem:[#allocation4 + $0x40] sm:$0xff]
    %v1161 = vld [vmem:[#allocation4 + $0x48] sm:$0xff]
    %v1162 = vld [vmem:[#allocation4 + $0x50] sm:$0xff]
    %v1163 = vld [vmem:[#allocation4 + $0x58] sm:$0xff]
    %v1164 = vld [vmem:[#allocation4 + $0x60] sm:$0xff]
    %v1165 = vld [vmem:[#allocation4 + $0x68] sm:$0xff]
    %v1166 = vld [vmem:[#allocation4 + $0x70] sm:$0xff]
    %v1167 = vld [vmem:[#allocation4 + $0x78] sm:$0xff]
    %v1168 = vld [vmem:[#allocation4 + $0x80] sm:$0xff]
    %v1169 = vld [vmem:[#allocation4 + $0x88] sm:$0xff]
    %v1170 = vld [vmem:[#allocation4 + $0x90] sm:$0xff]
    %v1171 = vld [vmem:[#allocation4 + $0x98] sm:$0xff]
    %v1172 = vld [vmem:[#allocation4 + $0xa0] sm:$0xff]
    %v1173 = vld [vmem:[#allocation4 + $0xa8] sm:$0xff]
    %v1174 = vld [vmem:[#allocation4 + $0xb0] sm:$0xff]
    %v1175 = vld [vmem:[#allocation4 + $0xb8] sm:$0xff]
    %v1176 = vld [vmem:[#allocation4 + $0xc0] sm:$0xff]
    %v1177 = vld [vmem:[#allocation4 + $0xc8] sm:$0xff]
    %v1178 = vld [vmem:[#allocation4 + $0xd0] sm:$0xff]
    %v1179 = vld [vmem:[#allocation4 + $0xd8] sm:$0xff]
    %v1180 = vld [vmem:[#allocation4 + $0xe0] sm:$0xff]
    %v1181 = vld [vmem:[#allocation4 + $0xe8] sm:$0xff]
    %v1182 = vld [vmem:[#allocation4 + $0xf0] sm:$0xff]
    %v1183 = vld [vmem:[#allocation4 + $0xf8] sm:$0xff]
    %v1184 = vld [vmem:[#allocation4 + $0x100] sm:$0xff]
    %v1185 = vld [vmem:[#allocation4 + $0x108] sm:$0xff]
    %v1186 = vld [vmem:[#allocation4 + $0x110] sm:$0xff]
    %v1187 = vld [vmem:[#allocation4 + $0x118] sm:$0xff]
    %v1188 = vld [vmem:[#allocation4 + $0x120] sm:$0xff]
    %v1189 = vld [vmem:[#allocation4 + $0x128] sm:$0xff]
    %v1190 = vld [vmem:[#allocation4 + $0x130] sm:$0xff]
    %v1191 = vld [vmem:[#allocation4 + $0x138] sm:$0xff]
    %v1192 = vld [vmem:[#allocation4 + $0x140] sm:$0xff]
    %v1193 = vld [vmem:[#allocation4 + $0x148] sm:$0xff]
    %v1194 = vld [vmem:[#allocation4 + $0x150] sm:$0xff]
    %v1195 = vld [vmem:[#allocation4 + $0x158] sm:$0xff]
    %v1196 = vld [vmem:[#allocation4 + $0x160] sm:$0xff]
    %v1197 = vld [vmem:[#allocation4 + $0x168] sm:$0xff]
    %v1198 = vld [vmem:[#allocation4 + $0x170] sm:$0xff]
    %v1199 = vld [vmem:[#allocation4 + $0x178] sm:$0xff]
    %v1200 = vld [vmem:[#allocation4 + $0x180] sm:$0xff]
    %v1201 = vld [vmem:[#allocation4 + $0x188] sm:$0xff]
    %v1202 = vld [vmem:[#allocation4 + $0x190] sm:$0xff]
    %v1203 = vld [vmem:[#allocation4 + $0x198] sm:$0xff]
    %v1204 = vld [vmem:[#allocation4 + $0x1a0] sm:$0xff]
    %v1205 = vld [vmem:[#allocation4 + $0x1a8] sm:$0xff]
    %v1206 = vld [vmem:[#allocation4 + $0x1b0] sm:$0xff]
    %v1207 = vld [vmem:[#allocation4 + $0x1b8] sm:$0xff]
    %v1208 = vld [vmem:[#allocation4 + $0x1c0] sm:$0xff]
    %v1209 = vld [vmem:[#allocation4 + $0x1c8] sm:$0xff]
    %v1210 = vld [vmem:[#allocation4 + $0x1d0] sm:$0xff]
    %v1211 = vld [vmem:[#allocation4 + $0x1d8] sm:$0xff]
    %v1212 = vld [vmem:[#allocation4 + $0x1e0] sm:$0xff]
    %v1213 = vld [vmem:[#allocation4 + $0x1e8] sm:$0xff]
    %v1214 = vld [vmem:[#allocation4 + $0x1f0] sm:$0xff]
    %v1215 = vld [vmem:[#allocation4 + $0x1f8] sm:$0xff]
    %v1216 = vpack.c.bf16 %v1144, %v1140
    %v1217 = vpack.c.bf16 %v1145, %v1141
    %v1218 = vpack.c.bf16 %v1146, %v1142
    %v1219 = vpack.c.bf16 %v1147, %v1143
    %1220 = vmatprep.subr.bf16.mxu0 %v1153
    %1221 = vmatpush1.bf16.msra.mxu0 %v1152
    %1222 = vmatprep.subr.bf16.mxu0 %v1155
    %1223 = vmatpush1.bf16.msra.mxu0 %v1154
    %1224 = vmatprep.subr.bf16.mxu0 %v1157
    %1225 = vmatpush1.bf16.msra.mxu0 %v1156
    %1226 = vmatprep.subr.bf16.mxu0 %v1159
    %1227 = vmatpush1.bf16.msra.mxu0 %v1158
    %1228 = vmatprep.subr.bf16.mxu0 %v1161
    %1229 = vmatpush1.bf16.msra.mxu0 %v1160
    %1230 = vmatprep.subr.bf16.mxu0 %v1163
    %1231 = vmatpush1.bf16.msra.mxu0 %v1162
    %1232 = vmatprep.subr.bf16.mxu0 %v1165
    %1233 = vmatpush1.bf16.msra.mxu0 %v1164
    %1234 = vmatprep.subr.bf16.mxu0 %v1167
    %1235 = vmatpush1.bf16.msra.mxu0 %v1166
    %1236 = vmatprep.subr.bf16.mxu0 %v1169
    %1237 = vmatpush1.bf16.msra.mxu0 %v1168
    %1238 = vmatprep.subr.bf16.mxu0 %v1171
    %1239 = vmatpush1.bf16.msra.mxu0 %v1170
    %1240 = vmatprep.subr.bf16.mxu0 %v1173
    %1241 = vmatpush1.bf16.msra.mxu0 %v1172
    %1242 = vmatprep.subr.bf16.mxu0 %v1175
    %1243 = vmatpush1.bf16.msra.mxu0 %v1174
    %1244 = vmatprep.subr.bf16.mxu0 %v1177
    %1245 = vmatpush1.bf16.msra.mxu0 %v1176
    %1246 = vmatprep.subr.bf16.mxu0 %v1179
    %1247 = vmatpush1.bf16.msra.mxu0 %v1178
    %1248 = vmatprep.subr.bf16.mxu0 %v1181
    %1249 = vmatpush1.bf16.msra.mxu0 %v1180
    %1250 = vmatprep.subr.bf16.mxu0 %v1183
    %1251 = vmatpush1.bf16.msra.mxu0 %v1182
    %1252 = vmatprep.mubr.bf16.mxu0 %v1217
    %1253 = vmatmul.mubr.bf16.gmra.mrb[0].mxu0 %v1216
    %v1254 = vpop.f32.mrb[0].mxu0
    %v1255 = vadd.f32 0.0, %v1254
    %v1256 = vpop.f32.mrb[0].mxu0
    %v1257 = vadd.f32 0.0, %v1256
    %v1258 = vpop.f32.mrb[0].mxu0
    %v1259 = vadd.f32 0.0, %v1258
    %v1260 = vpop.f32.mrb[0].mxu0
    %v1261 = vadd.f32 0.0, %v1260
    %1262 = vdwg.mxu0
    %1263 = vmatprep.subr.bf16.mxu0 %v1185
    %1264 = vmatpush1.bf16.msra.mxu0 %v1184
    %1265 = vmatprep.subr.bf16.mxu0 %v1187
    %1266 = vmatpush1.bf16.msra.mxu0 %v1186
    %1267 = vmatprep.subr.bf16.mxu0 %v1189
    %1268 = vmatpush1.bf16.msra.mxu0 %v1188
    %1269 = vmatprep.subr.bf16.mxu0 %v1191
    %1270 = vmatpush1.bf16.msra.mxu0 %v1190
    %1271 = vmatprep.subr.bf16.mxu0 %v1193
    %1272 = vmatpush1.bf16.msra.mxu0 %v1192
    %1273 = vmatprep.subr.bf16.mxu0 %v1195
    %1274 = vmatpush1.bf16.msra.mxu0 %v1194
    %1275 = vmatprep.subr.bf16.mxu0 %v1197
    %1276 = vmatpush1.bf16.msra.mxu0 %v1196
    %1277 = vmatprep.subr.bf16.mxu0 %v1199
    %1278 = vmatpush1.bf16.msra.mxu0 %v1198
    %1279 = vmatprep.subr.bf16.mxu0 %v1201
    %1280 = vmatpush1.bf16.msra.mxu0 %v1200
    %1281 = vmatprep.subr.bf16.mxu0 %v1203
    %1282 = vmatpush1.bf16.msra.mxu0 %v1202
    %1283 = vmatprep.subr.bf16.mxu0 %v1205
    %1284 = vmatpush1.bf16.msra.mxu0 %v1204
    %1285 = vmatprep.subr.bf16.mxu0 %v1207
    %1286 = vmatpush1.bf16.msra.mxu0 %v1206
    %1287 = vmatprep.subr.bf16.mxu0 %v1209
    %1288 = vmatpush1.bf16.msra.mxu0 %v1208
    %1289 = vmatprep.subr.bf16.mxu0 %v1211
    %1290 = vmatpush1.bf16.msra.mxu0 %v1210
    %1291 = vmatprep.subr.bf16.mxu0 %v1213
    %1292 = vmatpush1.bf16.msra.mxu0 %v1212
    %1293 = vmatprep.subr.bf16.mxu0 %v1215
    %1294 = vmatpush1.bf16.msra.mxu0 %v1214
    %1295 = vmatprep.mubr.bf16.mxu0 %v1219
    %1296 = vmatmul.mubr.bf16.gmra.mrb[0].mxu0 %v1218
    %v1297 = vpop.f32.mrb[0].mxu0
    %v1298 = vadd.f32 %v1255, %v1297
    %v1299 = vpop.f32.mrb[0].mxu0
    %v1300 = vadd.f32 %v1257, %v1299
    %v1301 = vpop.f32.mrb[0].mxu0
    %v1302 = vadd.f32 %v1259, %v1301
    %v1303 = vpop.f32.mrb[0].mxu0
    %v1304 = vadd.f32 %v1261, %v1303
    %1305 = vdwg.mxu0
    %s1306 = scalar_lea.vmem %s1, 24
    %v1307 = vld [vmem:[%s1306] ss:$2 sm:$0x3]
    %v1309 = vlaneseq
    %v1310 = vshrl.u32 %v1309, 7
    %v1311 = vsub.s32 0, %v1310
    %v1312 = vrot.slane %v1307, %v1311
    %v1313 = vlaneseq
    %v1314 = vshrl.u32 %v1313, 7
    %v1315 = vsub.s32 1, %v1314
    %v1316 = vrot.slane %v1307, %v1315
    %v1319 = vmul.f32 %v1298, %v1312
    %v1320 = vmul.f32 %v1300, %v1316
    %v1321 = vmul.f32 %v1302, %v1312
    %v1322 = vmul.f32 %v1304, %v1316
    %s1323 = scalar_lea.vmem %s1, 25
    %v1324 = vld [vmem:[%s1323] ss:$2 sm:$0x3]
    %v1326 = vlaneseq
    %v1327 = vshrl.u32 %v1326, 7
    %v1328 = vsub.s32 0, %v1327
    %v1329 = vrot.slane %v1324, %v1328
    %v1330 = vlaneseq
    %v1331 = vshrl.u32 %v1330, 7
    %v1332 = vsub.s32 1, %v1331
    %v1333 = vrot.slane %v1324, %v1332
    %v1336 = vadd.f32 %v1319, %v1329
    %v1337 = vadd.f32 %v1320, %v1333
    %v1338 = vadd.f32 %v1321, %v1329
    %v1339 = vadd.f32 %v1322, %v1333
    %v1340 = vmax.f32 %v1336, 0.0
    %v1341 = vmax.f32 %v1337, 0.0
    %v1342 = vmax.f32 %v1338, 0.0
    %v1343 = vmax.f32 %v1339, 0.0
    %s1344 = smul.u32 4, 80
    %s1345 = smul.u32 %s1344, 1
    %s1346 = sshll.u32 %s1345, 4
    %1347 = dma.done %s122, %s1346
    %v1348 = vld [vmem:[#allocation5] sm:$0xff]
    %v1349 = vld [vmem:[#allocation5 + $0x8] sm:$0xff]
    %v1350 = vld [vmem:[#allocation5 + $0x10] sm:$0xff]
    %v1351 = vld [vmem:[#allocation5 + $0x18] sm:$0xff]
    %v1352 = vld [vmem:[#allocation5 + $0x20] sm:$0xff]
    %v1353 = vld [vmem:[#allocation5 + $0x28] sm:$0xff]
    %v1354 = vld [vmem:[#allocation5 + $0x30] sm:$0xff]
    %v1355 = vld [vmem:[#allocation5 + $0x38] sm:$0xff]
    %v1356 = vld [vmem:[#allocation5 + $0x40] sm:$0xff]
    %v1357 = vld [vmem:[#allocation5 + $0x48] sm:$0xff]
    %v1358 = vld [vmem:[#allocation5 + $0x50] sm:$0xff]
    %v1359 = vld [vmem:[#allocation5 + $0x58] sm:$0xff]
    %v1360 = vld [vmem:[#allocation5 + $0x60] sm:$0xff]
    %v1361 = vld [vmem:[#allocation5 + $0x68] sm:$0xff]
    %v1362 = vld [vmem:[#allocation5 + $0x70] sm:$0xff]
    %v1363 = vld [vmem:[#allocation5 + $0x78] sm:$0xff]
    %v1364 = vpack.c.bf16 %v1342, %v1340
    %v1365 = vpack.c.bf16 %v1343, %v1341
    %1366 = vmatprep.subr.bf16.mxu0 0
    %1367 = vmatpush1.bf16.msra.mxu0 %v1348
    %1368 = vmatprep.subr.bf16.mxu0 0
    %1369 = vmatpush1.bf16.msra.mxu0 %v1349
    %1370 = vmatprep.subr.bf16.mxu0 0
    %1371 = vmatpush1.bf16.msra.mxu0 %v1350
    %1372 = vmatprep.subr.bf16.mxu0 0
    %1373 = vmatpush1.bf16.msra.mxu0 %v1351
    %1374 = vmatprep.subr.bf16.mxu0 0
    %1375 = vmatpush1.bf16.msra.mxu0 %v1352
    %1376 = vmatprep.subr.bf16.mxu0 0
    %1377 = vmatpush1.bf16.msra.mxu0 %v1353
    %1378 = vmatprep.subr.bf16.mxu0 0
    %1379 = vmatpush1.bf16.msra.mxu0 %v1354
    %1380 = vmatprep.subr.bf16.mxu0 0
    %1381 = vmatpush1.bf16.msra.mxu0 %v1355
    %1382 = vmatprep.subr.bf16.mxu0 0
    %1383 = vmatpush1.bf16.msra.mxu0 %v1356
    %1384 = vmatprep.subr.bf16.mxu0 0
    %1385 = vmatpush1.bf16.msra.mxu0 %v1357
    %1386 = vmatprep.subr.bf16.mxu0 0
    %1387 = vmatpush1.bf16.msra.mxu0 %v1358
    %1388 = vmatprep.subr.bf16.mxu0 0
    %1389 = vmatpush1.bf16.msra.mxu0 %v1359
    %1390 = vmatprep.subr.bf16.mxu0 0
    %1391 = vmatpush1.bf16.msra.mxu0 %v1360
    %1392 = vmatprep.subr.bf16.mxu0 0
    %1393 = vmatpush1.bf16.msra.mxu0 %v1361
    %1394 = vmatprep.subr.bf16.mxu0 0
    %1395 = vmatpush1.bf16.msra.mxu0 %v1362
    %1396 = vmatprep.subr.bf16.mxu0 0
    %1397 = vmatpush1.bf16.msra.mxu0 %v1363
    %1398 = vmatprep.mubr.bf16.mxu0 %v1365
    %1399 = vmatmul.mubr.bf16.gmra.mrb[0].mxu0 %v1364
    %v1400 = vpop.f32.mrb[0].mxu0
    %v1401 = vadd.f32 0.0, %v1400
    %v1402 = vpop.f32.mrb[0].mxu0
    %v1403 = vpop.f32.mrb[0].mxu0
    %v1404 = vadd.f32 0.0, %v1403
    %v1405 = vpop.f32.mrb[0].mxu0
    %1406 = vdwg.mxu0
    %v1407 = vld [vmem:[%s1 + $0x1c] sm:$0x1]
    %v1408 = vlaneseq
    %v1409 = vshrl.u32 %v1408, 7
    %v1410 = vsub.s32 0, %v1409
    %v1411 = vrot.slane %v1407, %v1410
    %v1412 = vmul.f32 %v1401, %v1411
    %v1413 = vmul.f32 %v1404, %v1411
    %v1414 = vld [vmem:[%s1 + $0x1d] sm:$0x1]
    %v1415 = vlaneseq
    %v1416 = vshrl.u32 %v1415, 7
    %v1417 = vsub.s32 0, %v1416
    %v1418 = vrot.slane %v1414, %v1417
    %v1419 = vadd.f32 %v1412, %v1418
    %v1420 = vadd.f32 %v1413, %v1418
    %v1421 = vmax.f32 %v1419, 0.0
    %v1422 = vmax.f32 %v1420, 0.0
    %v1423 = vld [vmem:[#allocation5 + $0x80] sm:$0xff]
    %v1424 = vld [vmem:[#allocation5 + $0x88] sm:$0xff]
    %v1425 = vld [vmem:[#allocation5 + $0x90] sm:$0xff]
    %v1426 = vld [vmem:[#allocation5 + $0x98] sm:$0xff]
    %v1427 = vld [vmem:[#allocation5 + $0xa0] sm:$0xff]
    %v1428 = vld [vmem:[#allocation5 + $0xa8] sm:$0xff]
    %v1429 = vld [vmem:[#allocation5 + $0xb0] sm:$0xff]
    %v1430 = vld [vmem:[#allocation5 + $0xb8] sm:$0xff]
    %v1431 = vpack.c.bf16 %v1422, %v1421
    %1432 = vmatprep.subr.bf16.mxu0 0
    %1433 = vmatpush1.bf16.msra.mxu0 %v1423
    %1434 = vmatprep.subr.bf16.mxu0 0
    %1435 = vmatpush1.bf16.msra.mxu0 %v1424
    %1436 = vmatprep.subr.bf16.mxu0 0
    %1437 = vmatpush1.bf16.msra.mxu0 %v1425
    %1438 = vmatprep.subr.bf16.mxu0 0
    %1439 = vmatpush1.bf16.msra.mxu0 %v1426
    %1440 = vmatprep.subr.bf16.mxu0 0
    %1441 = vmatpush1.bf16.msra.mxu0 %v1427
    %1442 = vmatprep.subr.bf16.mxu0 0
    %1443 = vmatpush1.bf16.msra.mxu0 %v1428
    %1444 = vmatprep.subr.bf16.mxu0 0
    %1445 = vmatpush1.bf16.msra.mxu0 %v1429
    %1446 = vmatprep.subr.bf16.mxu0 0
    %1447 = vmatpush1.bf16.msra.mxu0 %v1430
    %1448 = vmatprep.subr.bf16.mxu0 0
    %1449 = vmatpush1.bf16.msra.mxu0 0
    %1450 = vmatprep.subr.bf16.mxu0 0
    %1451 = vmatpush1.bf16.msra.mxu0 0
    %1452 = vmatprep.subr.bf16.mxu0 0
    %1453 = vmatpush1.bf16.msra.mxu0 0
    %1454 = vmatprep.subr.bf16.mxu0 0
    %1455 = vmatpush1.bf16.msra.mxu0 0
    %1456 = vmatprep.subr.bf16.mxu0 0
    %1457 = vmatpush1.bf16.msra.mxu0 0
    %1458 = vmatprep.subr.bf16.mxu0 0
    %1459 = vmatpush1.bf16.msra.mxu0 0
    %1460 = vmatprep.subr.bf16.mxu0 0
    %1461 = vmatpush1.bf16.msra.mxu0 0
    %1462 = vmatprep.subr.bf16.mxu0 0
    %1463 = vmatpush1.bf16.msra.mxu0 0
    %1464 = vmatprep.mubr.bf16.mxu0 0
    %1465 = vmatmul.mubr.bf16.gmra.mrb[0].mxu0 %v1431
    %v1466 = vpop.f32.mrb[0].mxu0
    %v1467 = vadd.f32 0.0, %v1466
    %v1468 = vpop.f32.mrb[0].mxu0
    %v1469 = vpop.f32.mrb[0].mxu0
    %v1470 = vadd.f32 0.0, %v1469
    %v1471 = vpop.f32.mrb[0].mxu0
    %1472 = vdwg.mxu0
    %v1473 = vld [vmem:[%s1 + $0x1e] sm:$0x1]
    %v1474 = vlaneseq
    %v1475 = vshrl.u32 %v1474, 7
    %v1476 = vsub.s32 0, %v1475
    %v1477 = vrot.slane %v1473, %v1476
    %v1478 = vmul.f32 %v1467, %v1477
    %v1479 = vmul.f32 %v1470, %v1477
    %v1480 = vld [vmem:[%s1 + $0x1f] sm:$0x1]
    %v1481 = vlaneseq
    %v1482 = vshrl.u32 %v1481, 7
    %v1483 = vsub.s32 0, %v1482
    %v1484 = vrot.slane %v1480, %v1483
    %v1485 = vadd.f32 %v1478, %v1484
    %v1486 = vadd.f32 %v1479, %v1484
    %v1487 = vmax.f32 %v1485, 0.0
    %v1488 = vmax.f32 %v1486, 0.0
    %v1489 = vld [vmem:[#allocation5 + $0xc0] sm:$0xff]
    %v1490 = vld [vmem:[#allocation5 + $0xc8] sm:$0xff]
    %v1491 = vld [vmem:[#allocation5 + $0xd0] sm:$0xff]
    %v1492 = vld [vmem:[#allocation5 + $0xd8] sm:$0xff]
    %v1493 = vld [vmem:[#allocation5 + $0xe0] sm:$0xff]
    %v1494 = vld [vmem:[#allocation5 + $0xe8] sm:$0xff]
    %v1495 = vld [vmem:[#allocation5 + $0xf0] sm:$0xff]
    %v1496 = vld [vmem:[#allocation5 + $0xf8] sm:$0xff]
    %v1497 = vpack.c.bf16 %v1488, %v1487
    %1498 = vmatprep.subr.bf16.mxu0 0
    %1499 = vmatpush1.bf16.msra.mxu0 %v1489
    %1500 = vmatprep.subr.bf16.mxu0 0
    %1501 = vmatpush1.bf16.msra.mxu0 %v1490
    %1502 = vmatprep.subr.bf16.mxu0 0
    %1503 = vmatpush1.bf16.msra.mxu0 %v1491
    %1504 = vmatprep.subr.bf16.mxu0 0
    %1505 = vmatpush1.bf16.msra.mxu0 %v1492
    %1506 = vmatprep.subr.bf16.mxu0 0
    %1507 = vmatpush1.bf16.msra.mxu0 %v1493
    %1508 = vmatprep.subr.bf16.mxu0 0
    %1509 = vmatpush1.bf16.msra.mxu0 %v1494
    %1510 = vmatprep.subr.bf16.mxu0 0
    %1511 = vmatpush1.bf16.msra.mxu0 %v1495
    %1512 = vmatprep.subr.bf16.mxu0 0
    %1513 = vmatpush1.bf16.msra.mxu0 %v1496
    %1514 = vmatprep.subr.bf16.mxu0 0
    %1515 = vmatpush1.bf16.msra.mxu0 0
    %1516 = vmatprep.subr.bf16.mxu0 0
    %1517 = vmatpush1.bf16.msra.mxu0 0
    %1518 = vmatprep.subr.bf16.mxu0 0
    %1519 = vmatpush1.bf16.msra.mxu0 0
    %1520 = vmatprep.subr.bf16.mxu0 0
    %1521 = vmatpush1.bf16.msra.mxu0 0
    %1522 = vmatprep.subr.bf16.mxu0 0
    %1523 = vmatpush1.bf16.msra.mxu0 0
    %1524 = vmatprep.subr.bf16.mxu0 0
    %1525 = vmatpush1.bf16.msra.mxu0 0
    %1526 = vmatprep.subr.bf16.mxu0 0
    %1527 = vmatpush1.bf16.msra.mxu0 0
    %1528 = vmatprep.subr.bf16.mxu0 0
    %1529 = vmatpush1.bf16.msra.mxu0 0
    %1530 = vmatprep.mubr.bf16.mxu0 0
    %1531 = vmatmul.mubr.bf16.gmra.mrb[0].mxu0 %v1497
    %v1532 = vpop.f32.mrb[0].mxu0
    %v1533 = vadd.f32 0.0, %v1532
    %v1534 = vpop.f32.mrb[0].mxu0
    %v1535 = vpop.f32.mrb[0].mxu0
    %v1536 = vadd.f32 0.0, %v1535
    %v1537 = vpop.f32.mrb[0].mxu0
    %1538 = vdwg.mxu0
    %v1539 = vld [vmem:[%s1 + $0x20] sm:$0x1]
    %v1540 = vlaneseq
    %v1541 = vshrl.u32 %v1540, 7
    %v1542 = vsub.s32 0, %v1541
    %v1543 = vrot.slane %v1539, %v1542
    %v1544 = vmul.f32 %v1533, %v1543
    %v1545 = vmul.f32 %v1536, %v1543
    %v1546 = vld [vmem:[%s1 + $0x21] sm:$0x1]
    %v1547 = vlaneseq
    %v1548 = vshrl.u32 %v1547, 7
    %v1549 = vsub.s32 0, %v1548
    %v1550 = vrot.slane %v1546, %v1549
    %v1551 = vadd.f32 %v1544, %v1550
    %v1552 = vadd.f32 %v1545, %v1550
    %v1553 = vmax.f32 %v1551, 0.0
    %v1554 = vmax.f32 %v1552, 0.0
    %v1555 = vld [vmem:[#allocation5 + $0x100] sm:$0xff]
    %v1556 = vld [vmem:[#allocation5 + $0x108] sm:$0xff]
    %v1557 = vld [vmem:[#allocation5 + $0x110] sm:$0xff]
    %v1558 = vld [vmem:[#allocation5 + $0x118] sm:$0xff]
    %v1559 = vld [vmem:[#allocation5 + $0x120] sm:$0xff]
    %v1560 = vld [vmem:[#allocation5 + $0x128] sm:$0xff]
    %v1561 = vld [vmem:[#allocation5 + $0x130] sm:$0xff]
    %v1562 = vld [vmem:[#allocation5 + $0x138] sm:$0xff]
    %v1563 = vpack.c.bf16 %v1554, %v1553
    %1564 = vmatprep.subr.bf16.mxu0 0
    %1565 = vmatpush1.bf16.msra.mxu0 %v1555
    %1566 = vmatprep.subr.bf16.mxu0 0
    %1567 = vmatpush1.bf16.msra.mxu0 %v1556
    %1568 = vmatprep.subr.bf16.mxu0 0
    %1569 = vmatpush1.bf16.msra.mxu0 %v1557
    %1570 = vmatprep.subr.bf16.mxu0 0
    %1571 = vmatpush1.bf16.msra.mxu0 %v1558
    %1572 = vmatprep.subr.bf16.mxu0 0
    %1573 = vmatpush1.bf16.msra.mxu0 %v1559
    %1574 = vmatprep.subr.bf16.mxu0 0
    %1575 = vmatpush1.bf16.msra.mxu0 %v1560
    %1576 = vmatprep.subr.bf16.mxu0 0
    %1577 = vmatpush1.bf16.msra.mxu0 %v1561
    %1578 = vmatprep.subr.bf16.mxu0 0
    %1579 = vmatpush1.bf16.msra.mxu0 %v1562
    %1580 = vmatprep.subr.bf16.mxu0 0
    %1581 = vmatpush1.bf16.msra.mxu0 0
    %1582 = vmatprep.subr.bf16.mxu0 0
    %1583 = vmatpush1.bf16.msra.mxu0 0
    %1584 = vmatprep.subr.bf16.mxu0 0
    %1585 = vmatpush1.bf16.msra.mxu0 0
    %1586 = vmatprep.subr.bf16.mxu0 0
    %1587 = vmatpush1.bf16.msra.mxu0 0
    %1588 = vmatprep.subr.bf16.mxu0 0
    %1589 = vmatpush1.bf16.msra.mxu0 0
    %1590 = vmatprep.subr.bf16.mxu0 0
    %1591 = vmatpush1.bf16.msra.mxu0 0
    %1592 = vmatprep.subr.bf16.mxu0 0
    %1593 = vmatpush1.bf16.msra.mxu0 0
    %1594 = vmatprep.subr.bf16.mxu0 0
    %1595 = vmatpush1.bf16.msra.mxu0 0
    %1596 = vmatprep.mubr.bf16.mxu0 0
    %1597 = vmatmul.mubr.bf16.gmra.mrb[0].mxu0 %v1563
    %v1598 = vpop.f32.mrb[0].mxu0
    %v1599 = vadd.f32 0.0, %v1598
    %v1600 = vpop.f32.mrb[0].mxu0
    %v1601 = vpop.f32.mrb[0].mxu0
    %v1602 = vadd.f32 0.0, %v1601
    %v1603 = vpop.f32.mrb[0].mxu0
    %1604 = vdwg.mxu0
    %v1605 = vld [vmem:[%s1 + $0x22] sm:$0x1]
    %v1606 = vlaneseq
    %v1607 = vshrl.u32 %v1606, 7
    %v1608 = vsub.s32 0, %v1607
    %v1609 = vrot.slane %v1605, %v1608
    %v1610 = vmul.f32 %v1599, %v1609
    %v1611 = vmul.f32 %v1602, %v1609
    %v1612 = vld [vmem:[%s1 + $0x23] sm:$0x1]
    %v1613 = vlaneseq
    %v1614 = vshrl.u32 %v1613, 7
    %v1615 = vsub.s32 0, %v1614
    %v1616 = vrot.slane %v1612, %v1615
    %v1617 = vadd.f32 %v1610, %v1616
    %v1618 = vadd.f32 %v1611, %v1616
    %1619 = vst [vmem:[#allocation7] sm:$0xff] %v1617
    %1620 = vst [vmem:[#allocation7 + $0x8] sm:$0xff] %v1618
    // Predicated region
    $region14: #{mlp_forward.1} parent=1 // pred_check
      _
    $region15: #{mlp_forward.1} parent=1 // pred_check_branch
      %1622 = sbr.rel (0) target = $region17
    $region16: #{mlp_forward.1} parent=1 // pred_region
      %s1624 = ssub.s32 256, 256
      %1625 = vsyncadd [#allocation8], %s1624
      %s1626 = sshll.u32 [#allocation7], 4
      %s1627 = int_to_ptr.vmem [resolvable:$true] %s1626
      %1632 = dma.vmem_to_hbm [thread:$0]  %s1627, 256, %s6, [#allocation8], 128, 128, 8
    $region17: #{mlp_forward.1} parent=1 // pred_fallthru
      _
    // Predicated region
    $region18: #{mlp_forward.1} parent=1 // pred_check
      _
    $region19: #{mlp_forward.1} parent=1 // pred_check_branch
      %1634 = sbr.rel (0) target = $region21
    $region20: #{mlp_forward.1} parent=1 // pred_region
      %1635 = dma.done [#allocation8], 256
    $region21: #{mlp_forward.1} parent=1 // pred_fallthru
      _
    %1636 = vsyncpa [#allocation8], 1
  %1637 = vsyncmov [#allocation6]
  %s1638 = vpop.sfrf %1637
  %p1639 = scmp.eq.s32.totalorder %s1638, 0
  %p1640 = pneg %p1639
  %1642 = shalt.err (%p1640)
  %s1643 = scalar_lea.sflag [#allocation6], 1
  %1644 = vsyncmov %s1643
  %s1645 = vpop.sfrf %1644
  %p1646 = scmp.eq.s32.totalorder %s1645, 0
  %p1647 = pneg %p1646
  %1649 = shalt.err (%p1647)
  %s1650 = scalar_lea.sflag [#allocation6], 2
  %1651 = vsyncmov %s1650
  %s1652 = vpop.sfrf %1651
  %p1653 = scmp.eq.s32.totalorder %s1652, 0
  %p1654 = pneg %p1653
  %1656 = shalt.err (%p1654)
  %s1657 = scalar_lea.sflag [#allocation6], 3
  %1658 = vsyncmov %s1657
  %s1659 = vpop.sfrf %1658
  %p1660 = scmp.eq.s32.totalorder %s1659, 0
  %p1661 = pneg %p1660
  %1663 = shalt.err (%p1661)

</llo_original>
